<compile_context>
chip_gen: v7x
topology: tpu7x:2x2x1
jax: 0.10.0
libtpu: 0.0.40
codegen_flags: <defaults>
</compile_context>

<pallas_src>
import jax
import jax.numpy as jnp
from jax.experimental import pallas as pl
from jax.experimental.pallas import tpu as pltpu

OBS_SIZE = 32          # small synthetic obs dim
HIDDEN = 512           # module hard-codes hidden_width = 512
ACTION_SIZE = 16       # synthetic action_size (num_outputs)
HEAD_PAD = 128         # fused head width (16 goal + 1 value + zero pad), lane-dense
OUT_W = HEAD_PAD + HIDDEN  # 640 = 5 * 128, fused [head | features] output
BATCH = 8
TILE_B = 256           # batch tile (multiple of 128; good MXU occupancy on v6e/v7x)


def hiro_high_kernel(x_ref,
                     w1_ref, w2_ref, w3_ref, wh_ref,
                     b_ref,
                     out_ref):
    # fc trunk: Linear -> ReLU (x3). Weights are bf16, accumulation f32.
    x = x_ref[...].astype(jnp.bfloat16)
    h = jnp.dot(x, w1_ref[...], preferred_element_type=jnp.float32) + b_ref[0:1, :]
    h = jnp.maximum(h, 0.0)
    h = jnp.dot(h.astype(jnp.bfloat16), w2_ref[...],
                preferred_element_type=jnp.float32) + b_ref[1:2, :]
    h = jnp.maximum(h, 0.0)
    h = jnp.dot(h.astype(jnp.bfloat16), w3_ref[...],
                preferred_element_type=jnp.float32) + b_ref[2:3, :]
    h = jnp.maximum(h, 0.0)

    # fused heads: [action_branch | value_branch | zero pad] in one 128-wide matmul
    head = jnp.dot(h.astype(jnp.bfloat16), wh_ref[...],
                   preferred_element_type=jnp.float32) + b_ref[3:4, :HEAD_PAD]
    # tanh only on the goal lanes (lane < ACTION_SIZE); value lane passes through
    lane = jax.lax.broadcasted_iota(jnp.int32, head.shape, 1)
    out_ref[:, :HEAD_PAD] = jnp.where(lane < ACTION_SIZE, jnp.tanh(head), head)
    out_ref[:, HEAD_PAD:] = h  # self._features


def hiro_high_forward(obs, params, *, tile_b=TILE_B):
    """Returns (goal_vector, value, features). All compute fused in one kernel."""
    B = obs.shape[0]
    w1, w2, w3, wh, b_all = params

    def round_up(x, m):
        return ((x + m - 1) // m) * m

    # Pad batch: at least one full bf16 vreg sublane group (16 rows); a multiple
    # of the batch tile when the batch exceeds a single tile.
    Bp = max(round_up(B, 16), 16)
    if Bp <= tile_b:
        tb = Bp
    else:
        tb = tile_b
        Bp = round_up(B, tile_b)
    if Bp != B:
        obs = jnp.zeros((Bp, obs.shape[1]), obs.dtype).at[:B].set(obs)

    num_tiles = Bp // tb

    # Constant block index -> weight/bias blocks stay VMEM-resident across the
    # whole batch grid (fetched once per call).
    const = lambda shape: pl.BlockSpec(shape, lambda i, _s=shape: tuple(0 for _ in _s))

    out = pl.pallas_call(
        hiro_high_kernel,
        out_shape=jax.ShapeDtypeStruct((Bp, OUT_W), jnp.float32),
        grid=(num_tiles,),
        in_specs=[
            pl.BlockSpec((tb, OBS_SIZE), lambda i: (i, 0)),
            const(w1.shape), const(w2.shape), const(w3.shape), const(wh.shape),
            const(b_all.shape),
        ],
        out_specs=pl.BlockSpec((tb, OUT_W), lambda i: (i, 0)),
        compiler_params=pltpu.CompilerParams(
            dimension_semantics=("parallel",),
            vmem_limit_bytes=32 << 20),
    )(obs, w1, w2, w3, wh, b_all)

    goal = out[:B, :ACTION_SIZE]
    value = out[:B, ACTION_SIZE:ACTION_SIZE + 1]
    feats = out[:B, HEAD_PAD:]
    return goal, value, feats


def init_params(key):
    """PyTorch-Linear-style init; weights stored bf16 (in,out), biases packed f32."""
    def linear(key, fan_in, fan_out):
        kw, kb = jax.random.split(key)
        bound = 1.0 / jnp.sqrt(fan_in)
        w = jax.random.uniform(kw, (fan_in, fan_out), jnp.float32, -bound, bound)
        b = jax.random.uniform(kb, (fan_out,), jnp.float32, -bound, bound)
        return w, b

    keys = jax.random.split(key, 5)
    w1, b1 = linear(keys[0], OBS_SIZE, HIDDEN)
    w2, b2 = linear(keys[1], HIDDEN, HIDDEN)
    w3, b3 = linear(keys[2], HIDDEN, HIDDEN)
    wa, ba = linear(keys[3], HIDDEN, ACTION_SIZE)
    wv, bv = linear(keys[4], HIDDEN, 1)

    # Fused head weight: columns [0:16]=wa, [16]=wv, rest MUST be zero (the pad
    # lanes of the fused head rely on it). bf16 like the trunk weights.
    wh = jnp.zeros((HIDDEN, HEAD_PAD), jnp.float32)
    wh = wh.at[:, :ACTION_SIZE].set(wa)
    wh = wh.at[:, ACTION_SIZE].set(wv[:, 0])

    # Packed biases: rows 0-2 = trunk, row 3 = [ba | bv | zeros].
    b_all = jnp.zeros((4, HIDDEN), jnp.float32)
    b_all = b_all.at[0].set(b1).at[1].set(b2).at[2].set(b3)
    b_all = b_all.at[3, :ACTION_SIZE].set(ba)
    b_all = b_all.at[3, ACTION_SIZE].set(bv[0])

    to_bf16 = lambda w: w.astype(jnp.bfloat16)
    return (to_bf16(w1), to_bf16(w2), to_bf16(w3), to_bf16(wh), b_all)


def reference_forward(obs, params):
    """Pure-JAX mirror of the kernel math (bf16 operands, f32 accumulation)."""
    w1, w2, w3, wh, b_all = params
    mm = lambda a, w: jnp.dot(a.astype(jnp.bfloat16), w,
                              preferred_element_type=jnp.float32)
    h = jnp.maximum(mm(obs, w1) + b_all[0:1, :], 0.0)
    h = jnp.maximum(mm(h, w2) + b_all[1:2, :], 0.0)
    h = jnp.maximum(mm(h, w3) + b_all[2:3, :], 0.0)
    head = mm(h, wh) + b_all[3:4, :HEAD_PAD]
    goal = jnp.tanh(head[:, :ACTION_SIZE])
    value = head[:, ACTION_SIZE:ACTION_SIZE + 1]
    return goal, value, h


if __name__ == "__main__":
    key = jax.random.PRNGKey(0)
    k_obs, k_par = jax.random.split(key)
    obs = jax.random.normal(k_obs, (BATCH, OBS_SIZE), jnp.float32)
    params = init_params(k_par)

    goal, value, feats = hiro_high_forward(obs, params)
    jax.block_until_ready((goal, value, feats))

    ref_goal, ref_value, ref_feats = reference_forward(obs, params)
    assert goal.shape == (BATCH, ACTION_SIZE)
    assert value.shape == (BATCH, 1)
    assert feats.shape == (BATCH, HIDDEN)
    assert jnp.allclose(goal, ref_goal, atol=2e-3, rtol=2e-3)
    assert jnp.allclose(value, ref_value, atol=2e-2, rtol=2e-2)
    assert jnp.allclose(feats, ref_feats, atol=2e-2, rtol=2e-2)

    print("KERNEL_OK")
</pallas_src>

<mosaic_0001>
module attributes {stable_mosaic.version = 11 : i64} {
  func.func @hiro_high_kernel(%arg0: i32, %arg1: memref<16x32xf32, #tpu.memory_space<vmem>>, %arg2: memref<32x512xbf16, #tpu.memory_space<vmem>>, %arg3: memref<512x512xbf16, #tpu.memory_space<vmem>>, %arg4: memref<512x512xbf16, #tpu.memory_space<vmem>>, %arg5: memref<512x128xbf16, #tpu.memory_space<vmem>>, %arg6: memref<4x512xf32, #tpu.memory_space<vmem>>, %arg7: memref<16x640xf32, #tpu.memory_space<vmem>>) attributes {dimension_semantics = [#tpu.dimension_semantics<parallel>], iteration_bounds = array<i64: 1>, scalar_prefetch = 0 : i64, scratch_operands = 0 : i64, tpu.core_type = #tpu.core_type<tc>, window_params = [{transform_indices = @transform_0, window_bounds = array<i64: 16, 32>}, {pipeline_mode = #tpu.pipeline_mode<synchronous>, transform_indices = @transform_1, window_bounds = array<i64: 32, 512>}, {pipeline_mode = #tpu.pipeline_mode<synchronous>, transform_indices = @transform_2, window_bounds = array<i64: 512, 512>}, {pipeline_mode = #tpu.pipeline_mode<synchronous>, transform_indices = @transform_3, window_bounds = array<i64: 512, 512>}, {pipeline_mode = #tpu.pipeline_mode<synchronous>, transform_indices = @transform_4, window_bounds = array<i64: 512, 128>}, {pipeline_mode = #tpu.pipeline_mode<synchronous>, transform_indices = @transform_5, window_bounds = array<i64: 4, 512>}, {transform_indices = @transform_6, window_bounds = array<i64: 16, 640>}]} {
    %c0 = arith.constant 0 : index
    %c0_0 = arith.constant 0 : index
    %0 = vector.load %arg1[%c0, %c0_0] : memref<16x32xf32, #tpu.memory_space<vmem>>, vector<16x32xf32>
    %1 = arith.truncf %0 : vector<16x32xf32> to vector<16x32xbf16>
    %c0_1 = arith.constant 0 : index
    %c0_2 = arith.constant 0 : index
    %2 = vector.load %arg2[%c0_1, %c0_2] : memref<32x512xbf16, #tpu.memory_space<vmem>>, vector<32x512xbf16>
    %cst = arith.constant dense<0.000000e+00> : vector<16x512xf32>
    %3 = tpu.matmul %1, %2, %cst {dimension_numbers = #tpu.dot_dimension_numbers<[1], [0], [0], [1], [0, 0, 1, 1], [], []>} : vector<16x32xbf16>, vector<32x512xbf16>, vector<16x512xf32> -> vector<16x512xf32>
    %c0_3 = arith.constant 0 : index
    %c0_4 = arith.constant 0 : index
    %4 = vector.load %arg6[%c0_3, %c0_4] : memref<4x512xf32, #tpu.memory_space<vmem>>, vector<1x512xf32>
    %5 = vector.broadcast %4 : vector<1x512xf32> to vector<16x512xf32>
    %6 = arith.addf %3, %5 : vector<16x512xf32>
    %cst_5 = arith.constant 0.000000e+00 : f32
    %7 = vector.broadcast %cst_5 : f32 to vector<16x512xf32>
    %8 = arith.maximumf %6, %7 : vector<16x512xf32>
    %9 = arith.truncf %8 : vector<16x512xf32> to vector<16x512xbf16>
    %c0_6 = arith.constant 0 : index
    %c0_7 = arith.constant 0 : index
    %10 = vector.load %arg3[%c0_6, %c0_7] : memref<512x512xbf16, #tpu.memory_space<vmem>>, vector<512x512xbf16>
    %cst_8 = arith.constant dense<0.000000e+00> : vector<16x512xf32>
    %11 = tpu.matmul %9, %10, %cst_8 {dimension_numbers = #tpu.dot_dimension_numbers<[1], [0], [0], [1], [0, 0, 1, 1], [], []>} : vector<16x512xbf16>, vector<512x512xbf16>, vector<16x512xf32> -> vector<16x512xf32>
    %c1 = arith.constant 1 : index
    %c0_9 = arith.constant 0 : index
    %12 = vector.load %arg6[%c1, %c0_9] : memref<4x512xf32, #tpu.memory_space<vmem>>, vector<1x512xf32>
    %13 = vector.broadcast %12 : vector<1x512xf32> to vector<16x512xf32>
    %14 = arith.addf %11, %13 : vector<16x512xf32>
    %cst_10 = arith.constant 0.000000e+00 : f32
    %15 = vector.broadcast %cst_10 : f32 to vector<16x512xf32>
    %16 = arith.maximumf %14, %15 : vector<16x512xf32>
    %17 = arith.truncf %16 : vector<16x512xf32> to vector<16x512xbf16>
    %c0_11 = arith.constant 0 : index
    %c0_12 = arith.constant 0 : index
    %18 = vector.load %arg4[%c0_11, %c0_12] : memref<512x512xbf16, #tpu.memory_space<vmem>>, vector<512x512xbf16>
    %cst_13 = arith.constant dense<0.000000e+00> : vector<16x512xf32>
    %19 = tpu.matmul %17, %18, %cst_13 {dimension_numbers = #tpu.dot_dimension_numbers<[1], [0], [0], [1], [0, 0, 1, 1], [], []>} : vector<16x512xbf16>, vector<512x512xbf16>, vector<16x512xf32> -> vector<16x512xf32>
    %c2 = arith.constant 2 : index
    %c0_14 = arith.constant 0 : index
    %20 = vector.load %arg6[%c2, %c0_14] : memref<4x512xf32, #tpu.memory_space<vmem>>, vector<1x512xf32>
    %21 = vector.broadcast %20 : vector<1x512xf32> to vector<16x512xf32>
    %22 = arith.addf %19, %21 : vector<16x512xf32>
    %cst_15 = arith.constant 0.000000e+00 : f32
    %23 = vector.broadcast %cst_15 : f32 to vector<16x512xf32>
    %24 = arith.maximumf %22, %23 : vector<16x512xf32>
    %25 = arith.truncf %24 : vector<16x512xf32> to vector<16x512xbf16>
    %c0_16 = arith.constant 0 : index
    %c0_17 = arith.constant 0 : index
    %26 = vector.load %arg5[%c0_16, %c0_17] : memref<512x128xbf16, #tpu.memory_space<vmem>>, vector<512x128xbf16>
    %cst_18 = arith.constant dense<0.000000e+00> : vector<16x128xf32>
    %27 = tpu.matmul %25, %26, %cst_18 {dimension_numbers = #tpu.dot_dimension_numbers<[1], [0], [0], [1], [0, 0, 1, 1], [], []>} : vector<16x512xbf16>, vector<512x128xbf16>, vector<16x128xf32> -> vector<16x128xf32>
    %c3 = arith.constant 3 : index
    %c0_19 = arith.constant 0 : index
    %28 = vector.load %arg6[%c3, %c0_19] : memref<4x512xf32, #tpu.memory_space<vmem>>, vector<1x128xf32>
    %29 = vector.broadcast %28 : vector<1x128xf32> to vector<16x128xf32>
    %30 = arith.addf %27, %29 : vector<16x128xf32>
    %31 = tpu.iota {dimensions = array<i32: 1>} : vector<16x128xi32>
    %c16_i32 = arith.constant 16 : i32
    %32 = vector.broadcast %c16_i32 : i32 to vector<16x128xi32>
    %33 = arith.cmpi slt, %31, %32 : vector<16x128xi32>
    %34 = math.tanh %30 : vector<16x128xf32>
    %35 = arith.select %33, %34, %30 : vector<16x128xi1>, vector<16x128xf32>
    %c0_20 = arith.constant 0 : index
    %c0_21 = arith.constant 0 : index
    %36 = vector.load %arg7[%c0_20, %c0_21] : memref<16x640xf32, #tpu.memory_space<vmem>>, vector<16x128xf32>
    tpu.vector_store %arg7[%c0_20, %c0_21], %35 {strides = array<i32>} : memref<16x640xf32, #tpu.memory_space<vmem>>, vector<16x128xf32>,
    %c0_22 = arith.constant 0 : index
    %c128 = arith.constant 128 : index
    %37 = vector.load %arg7[%c0_22, %c128] : memref<16x640xf32, #tpu.memory_space<vmem>>, vector<16x512xf32>
    tpu.vector_store %arg7[%c0_22, %c128], %24 {strides = array<i32>} : memref<16x640xf32, #tpu.memory_space<vmem>>, vector<16x512xf32>,
    return
  }
  func.func @transform_0(%arg0: i32) -> (i32, i32) {
    %c0_i32 = arith.constant 0 : i32
    %c0_i32_0 = arith.constant 0 : i32
    return %arg0, %c0_i32 : i32, i32
  }
  func.func @transform_1(%arg0: i32) -> (i32, i32) {
    %c0_i32 = arith.constant 0 : i32
    %c0_i32_0 = arith.constant 0 : i32
    %c0_i32_1 = arith.constant 0 : i32
    return %c0_i32, %c0_i32_0 : i32, i32
  }
  func.func @transform_2(%arg0: i32) -> (i32, i32) {
    %c0_i32 = arith.constant 0 : i32
    %c0_i32_0 = arith.constant 0 : i32
    %c0_i32_1 = arith.constant 0 : i32
    return %c0_i32, %c0_i32_0 : i32, i32
  }
  func.func @transform_3(%arg0: i32) -> (i32, i32) {
    %c0_i32 = arith.constant 0 : i32
    %c0_i32_0 = arith.constant 0 : i32
    %c0_i32_1 = arith.constant 0 : i32
    return %c0_i32, %c0_i32_0 : i32, i32
  }
  func.func @transform_4(%arg0: i32) -> (i32, i32) {
    %c0_i32 = arith.constant 0 : i32
    %c0_i32_0 = arith.constant 0 : i32
    %c0_i32_1 = arith.constant 0 : i32
    return %c0_i32, %c0_i32_0 : i32, i32
  }
  func.func @transform_5(%arg0: i32) -> (i32, i32) {
    %c0_i32 = arith.constant 0 : i32
    %c0_i32_0 = arith.constant 0 : i32
    %c0_i32_1 = arith.constant 0 : i32
    return %c0_i32, %c0_i32_0 : i32, i32
  }
  func.func @transform_6(%arg0: i32) -> (i32, i32) {
    %c0_i32 = arith.constant 0 : i32
    %c0_i32_0 = arith.constant 0 : i32
    return %arg0, %c0_i32 : i32, i32
  }
}

</mosaic_0001>

<llo_original>
// kernel: tpu_custom_call.1
$region0: #{tpu_custom_call.1}
  #allocation0 [shape = 'u32[]', space=smem, size = 0x4, offset = 0x4, fixed_abs, tag = 'smem constant byte address 0x4 - core index']
  #allocation1 [shape = 'u32[144,128]{1,0:T(1,128)}', space=vmem, size = 0x12000, scoped, tag = 'internal scratch']
  %s0 = inlined_call_operand.hbm [shape: f32[16,32], index: 0, kind: input, shape index: {}]
  %s1 = inlined_call_operand.hbm [shape: bf16[32,512], index: 1, kind: input, shape index: {}]
  %s2 = inlined_call_operand.hbm [shape: bf16[512,512], index: 2, kind: input, shape index: {}]
  %s3 = inlined_call_operand.hbm [shape: bf16[512,512], index: 3, kind: input, shape index: {}]
  %s4 = inlined_call_operand.hbm [shape: bf16[512,128], index: 4, kind: input, shape index: {}]
  %s5 = inlined_call_operand.vmem [shape: f32[4,512], index: 5, kind: input, shape index: {}]
  %s6 = inlined_call_operand.hbm [shape: f32[16,640], index: 6, kind: output, shape index: {}]
  %s7 = sld [smem:[#allocation0]]
  $region54: #{tpu_custom_call.1} parent=0
    _
  %s9 = ssub.s32 1, %s7
  %s10 = scalar_select 0, %s9, %s7
  $region1: #{tpu_custom_call.1} parent=0
    #allocation2 [shape = 'u8[8192]{0}', space=vmem, size = 0x2000, scoped, tag = 'input window, operand 0, single buffered']
    #allocation3 [shape = 's32[1]{0}', space=sflag, size = 0x4, scoped, tag = 'scoped memory for tpu_custom_call.1']
    #allocation4 [shape = 's32[1]{0}', space=sflag, size = 0x4, scoped, tag = 'scoped memory for tpu_custom_call.1']
    #allocation5 [shape = 'u8[32768]{0}', space=vmem, size = 0x8000, scoped, tag = 'input window, operand 1, single buffered']
    #allocation6 [shape = 's32[1]{0}', space=sflag, size = 0x4, scoped, tag = 'scoped memory for tpu_custom_call.1']
    #allocation7 [shape = 'u8[524288]{0}', space=vmem, size = 0x80000, scoped, tag = 'input window, operand 2, single buffered']
    #allocation8 [shape = 'u8[524288]{0}', space=vmem, size = 0x80000, scoped, tag = 'input window, operand 3, single buffered']
    #allocation9 [shape = 's32[1]{0}', space=sflag, size = 0x4, scoped, tag = 'scoped memory for tpu_custom_call.1']
    #allocation10 [shape = 'u8[131072]{0}', space=vmem, size = 0x20000, scoped, tag = 'input window, operand 4, single buffered']
    #allocation11 [shape = 'u8[40960]{0}', space=vmem, size = 0xa000, scoped, tag = 'output window, operand 0, single buffered']
    %11 = vsyncpa [#allocation3], 0
    %12 = vsyncpa [#allocation6], 0
    %13 = vsyncpa [#allocation9], 0
    %14 = vsyncpa [#allocation4], 0
    // Predicated region
    $region2: #{tpu_custom_call.1} parent=1 // pred_check
      _
    $region3: #{tpu_custom_call.1} parent=1 // pred_check_branch
      %16 = sbr.rel (0) target = $region5
    $region4: #{tpu_custom_call.1} parent=1 // pred_region
      %s18 = ssub.s32 256, 256
      %19 = vsyncadd [#allocation3], %s18
      %s20 = sshll.u32 [#allocation2], 4
      %s21 = int_to_ptr.vmem [resolvable:$true] %s20
      %26 = dma.hbm_to_vmem [thread:$0]  %s0, 256, %s21, [#allocation3], 128, 128, 8
    $region5: #{tpu_custom_call.1} parent=1 // pred_fallthru
      _
    // Predicated region
    $region6: #{tpu_custom_call.1} parent=1 // pred_check
      _
    $region7: #{tpu_custom_call.1} parent=1 // pred_check_branch
      %28 = sbr.rel (0) target = $region9
    $region8: #{tpu_custom_call.1} parent=1 // pred_region
      %s30 = ssub.s32 1024, 1024
      %31 = vsyncadd [#allocation6], %s30
      %s32 = sshll.u32 [#allocation5], 4
      %s33 = int_to_ptr.vmem [resolvable:$true] %s32
      %38 = dma.hbm_to_vmem [thread:$0]  %s1, 1024, %s33, [#allocation6], 256, 256, 16
    $region9: #{tpu_custom_call.1} parent=1 // pred_fallthru
      _
    // Predicated region
    $region10: #{tpu_custom_call.1} parent=1 // pred_check
      _
    $region11: #{tpu_custom_call.1} parent=1 // pred_check_branch
      %40 = sbr.rel (0) target = $region13
    $region12: #{tpu_custom_call.1} parent=1 // pred_region
      %s42 = ssub.s32 16384, 16384
      %43 = vsyncadd [#allocation6], %s42
      %s44 = sshll.u32 [#allocation7], 4
      %s45 = int_to_ptr.vmem [resolvable:$true] %s44
      %50 = dma.hbm_to_vmem [thread:$0]  %s2, 16384, %s45, [#allocation6], 256, 256, 16
    $region13: #{tpu_custom_call.1} parent=1 // pred_fallthru
      _
    // Predicated region
    $region14: #{tpu_custom_call.1} parent=1 // pred_check
      _
    $region15: #{tpu_custom_call.1} parent=1 // pred_check_branch
      %52 = sbr.rel (0) target = $region17
    $region16: #{tpu_custom_call.1} parent=1 // pred_region
      %s54 = ssub.s32 16384, 16384
      %55 = vsyncadd [#allocation9], %s54
      %s56 = sshll.u32 [#allocation8], 4
      %s57 = int_to_ptr.vmem [resolvable:$true] %s56
      %62 = dma.hbm_to_vmem [thread:$0]  %s3, 16384, %s57, [#allocation9], 256, 256, 16
    $region17: #{tpu_custom_call.1} parent=1 // pred_fallthru
      _
    // Predicated region
    $region18: #{tpu_custom_call.1} parent=1 // pred_check
      _
    $region19: #{tpu_custom_call.1} parent=1 // pred_check_branch
      %64 = sbr.rel (0) target = $region21
    $region20: #{tpu_custom_call.1} parent=1 // pred_region
      %s66 = ssub.s32 4096, 4096
      %67 = vsyncadd [#allocation9], %s66
      %s68 = sshll.u32 [#allocation10], 4
      %s69 = int_to_ptr.vmem [resolvable:$true] %s68
      %74 = dma.hbm_to_vmem [thread:$0]  %s4, 4096, %s69, [#allocation9], 64, 64, 4
    $region21: #{tpu_custom_call.1} parent=1 // pred_fallthru
      _
    // Predicated region
    $region22: #{tpu_custom_call.1} parent=1 // pred_check
      _
    $region23: #{tpu_custom_call.1} parent=1 // pred_check_branch
      %76 = sbr.rel (0) target = $region25
    $region24: #{tpu_custom_call.1} parent=1 // pred_region
      _
    $region25: #{tpu_custom_call.1} parent=1 // pred_fallthru
      _
    // Predicated region
    $region26: #{tpu_custom_call.1} parent=1 // pred_check
      _
    $region27: #{tpu_custom_call.1} parent=1 // pred_check_branch
      %78 = sbr.rel (0) target = $region29
    $region28: #{tpu_custom_call.1} parent=1 // pred_region
      %79 = dma.done [#allocation3], 256
    $region29: #{tpu_custom_call.1} parent=1 // pred_fallthru
      _
    // Predicated region
    $region30: #{tpu_custom_call.1} parent=1 // pred_check
      _
    $region31: #{tpu_custom_call.1} parent=1 // pred_check_branch
      %81 = sbr.rel (0) target = $region33
    $region32: #{tpu_custom_call.1} parent=1 // pred_region
      %82 = dma.done [#allocation6], 1024
    $region33: #{tpu_custom_call.1} parent=1 // pred_fallthru
      _
    // Predicated region
    $region34: #{tpu_custom_call.1} parent=1 // pred_check
      _
    $region35: #{tpu_custom_call.1} parent=1 // pred_check_branch
      %84 = sbr.rel (0) target = $region37
    $region36: #{tpu_custom_call.1} parent=1 // pred_region
      %85 = dma.done [#allocation6], 16384
    $region37: #{tpu_custom_call.1} parent=1 // pred_fallthru
      _
    // Predicated region
    $region38: #{tpu_custom_call.1} parent=1 // pred_check
      _
    $region39: #{tpu_custom_call.1} parent=1 // pred_check_branch
      %87 = sbr.rel (0) target = $region41
    $region40: #{tpu_custom_call.1} parent=1 // pred_region
      %88 = dma.done [#allocation9], 16384
    $region41: #{tpu_custom_call.1} parent=1 // pred_fallthru
      _
    // Predicated region
    $region42: #{tpu_custom_call.1} parent=1 // pred_check
      _
    $region43: #{tpu_custom_call.1} parent=1 // pred_check_branch
      %90 = sbr.rel (0) target = $region45
    $region44: #{tpu_custom_call.1} parent=1 // pred_region
      %91 = dma.done [#allocation9], 4096
    $region45: #{tpu_custom_call.1} parent=1 // pred_fallthru
      _
    %v93 = vld [vmem:[#allocation2] sm:$0xff]
    %v94 = vld [vmem:[#allocation2 + $0x8] sm:$0xff]
    %v95 = vpack.c.bf16 %v94, %v93
    %v96 = vld [vmem:[#allocation5] sm:$0xff]
    %v97 = vld [vmem:[#allocation5 + $0x8] sm:$0xff]
    %v98 = vld [vmem:[#allocation5 + $0x10] sm:$0xff]
    %v99 = vld [vmem:[#allocation5 + $0x18] sm:$0xff]
    %v100 = vld [vmem:[#allocation5 + $0x20] sm:$0xff]
    %v101 = vld [vmem:[#allocation5 + $0x28] sm:$0xff]
    %v102 = vld [vmem:[#allocation5 + $0x30] sm:$0xff]
    %v103 = vld [vmem:[#allocation5 + $0x38] sm:$0xff]
    %v104 = vld [vmem:[%s5] ss:$4 sm:$0xf]
    %v106 = vlaneseq
    %v107 = vshrl.u32 %v106, 7
    %v108 = vsub.s32 0, %v107
    %v109 = vrot.slane %v104, %v108
    %v110 = vlaneseq
    %v111 = vshrl.u32 %v110, 7
    %v112 = vsub.s32 1, %v111
    %v113 = vrot.slane %v104, %v112
    %v114 = vlaneseq
    %v115 = vshrl.u32 %v114, 7
    %v116 = vsub.s32 2, %v115
    %v117 = vrot.slane %v104, %v116
    %v118 = vlaneseq
    %v119 = vshrl.u32 %v118, 7
    %v120 = vsub.s32 3, %v119
    %v121 = vrot.slane %v104, %v120
    %v134 = vunpack.c.l.b16 %v96
    %v135 = vunpack.c.h.b16 %v96
    %v136 = vunpack.c.l.b16 %v97
    %v137 = vunpack.c.h.b16 %v97
    %v138 = vunpack.c.l.b16 %v98
    %v139 = vunpack.c.h.b16 %v98
    %v140 = vunpack.c.l.b16 %v99
    %v141 = vunpack.c.h.b16 %v99
    %v142 = vunpack.c.l.b16 %v100
    %v143 = vunpack.c.h.b16 %v100
    %v144 = vunpack.c.l.b16 %v101
    %v145 = vunpack.c.h.b16 %v101
    %v146 = vunpack.c.l.b16 %v102
    %v147 = vunpack.c.h.b16 %v102
    %v148 = vunpack.c.l.b16 %v103
    %v149 = vunpack.c.h.b16 %v103
    %v150 = vpack.c.b16 %v138, %v134
    %v151 = vpack.c.b16 %v139, %v135
    %v152 = vpack.c.b16 %v140, %v136
    %v153 = vpack.c.b16 %v141, %v137
    %v154 = vpack.c.b16 %v146, %v142
    %v155 = vpack.c.b16 %v147, %v143
    %v156 = vpack.c.b16 %v148, %v144
    %v157 = vpack.c.b16 %v149, %v145
    %vm166 = vcmask 261120
    %v168 = vsel %vm166, %v95, 0
    %170 = vmatprep.subr.bf16.mxu0 %v151
    %171 = vmatpush1.bf16.msra.mxu0 %v150
    %172 = vmatprep.subr.bf16.mxu0 %v155
    %173 = vmatpush1.bf16.msra.mxu0 %v154
    %174 = vmatprep.subr.bf16.mxu0 0
    %175 = vmatpush1.bf16.msra.mxu0 0
    %176 = vmatprep.subr.bf16.mxu0 0
    %177 = vmatpush1.bf16.msra.mxu0 0
    %178 = vmatprep.subr.bf16.mxu0 0
    %179 = vmatpush1.bf16.msra.mxu0 0
    %180 = vmatprep.subr.bf16.mxu0 0
    %181 = vmatpush1.bf16.msra.mxu0 0
    %182 = vmatprep.subr.bf16.mxu0 0
    %183 = vmatpush1.bf16.msra.mxu0 0
    %184 = vmatprep.subr.bf16.mxu0 0
    %185 = vmatpush1.bf16.msra.mxu0 0
    %186 = vmatprep.subr.bf16.mxu0 0
    %187 = vmatpush1.bf16.msra.mxu0 0
    %188 = vmatprep.subr.bf16.mxu0 0
    %189 = vmatpush1.bf16.msra.mxu0 0
    %190 = vmatprep.subr.bf16.mxu0 0
    %191 = vmatpush1.bf16.msra.mxu0 0
    %192 = vmatprep.subr.bf16.mxu0 0
    %193 = vmatpush1.bf16.msra.mxu0 0
    %194 = vmatprep.subr.bf16.mxu0 0
    %195 = vmatpush1.bf16.msra.mxu0 0
    %196 = vmatprep.subr.bf16.mxu0 0
    %197 = vmatpush1.bf16.msra.mxu0 0
    %198 = vmatprep.subr.bf16.mxu0 0
    %199 = vmatpush1.bf16.msra.mxu0 0
    %200 = vmatprep.subr.bf16.mxu0 0
    %201 = vmatpush1.bf16.msra.mxu0 0
    %202 = vmatprep.mubr.bf16.mxu0 0
    %203 = vmatmul.mubr.bf16.gmra.mrb[0].mxu0 %v168
    %v204 = vpop.f32.mrb[0].mxu0
    %v205 = vadd.f32 %v109, %v204
    %v206 = vpop.f32.mrb[0].mxu0
    %v207 = vadd.f32 %v113, %v206
    %v208 = vpop.f32.mrb[0].mxu0
    %v209 = vadd.f32 %v109, %v208
    %v210 = vpop.f32.mrb[0].mxu0
    %v211 = vadd.f32 %v113, %v210
    %212 = vdwg.mxu0
    %213 = vmatprep.subr.bf16.mxu0 %v153
    %214 = vmatpush1.bf16.msra.mxu0 %v152
    %215 = vmatprep.subr.bf16.mxu0 %v157
    %216 = vmatpush1.bf16.msra.mxu0 %v156
    %217 = vmatprep.subr.bf16.mxu0 0
    %218 = vmatpush1.bf16.msra.mxu0 0
    %219 = vmatprep.subr.bf16.mxu0 0
    %220 = vmatpush1.bf16.msra.mxu0 0
    %221 = vmatprep.subr.bf16.mxu0 0
    %222 = vmatpush1.bf16.msra.mxu0 0
    %223 = vmatprep.subr.bf16.mxu0 0
    %224 = vmatpush1.bf16.msra.mxu0 0
    %225 = vmatprep.subr.bf16.mxu0 0
    %226 = vmatpush1.bf16.msra.mxu0 0
    %227 = vmatprep.subr.bf16.mxu0 0
    %228 = vmatpush1.bf16.msra.mxu0 0
    %229 = vmatprep.subr.bf16.mxu0 0
    %230 = vmatpush1.bf16.msra.mxu0 0
    %231 = vmatprep.subr.bf16.mxu0 0
    %232 = vmatpush1.bf16.msra.mxu0 0
    %233 = vmatprep.subr.bf16.mxu0 0
    %234 = vmatpush1.bf16.msra.mxu0 0
    %235 = vmatprep.subr.bf16.mxu0 0
    %236 = vmatpush1.bf16.msra.mxu0 0
    %237 = vmatprep.subr.bf16.mxu0 0
    %238 = vmatpush1.bf16.msra.mxu0 0
    %239 = vmatprep.subr.bf16.mxu0 0
    %240 = vmatpush1.bf16.msra.mxu0 0
    %241 = vmatprep.subr.bf16.mxu0 0
    %242 = vmatpush1.bf16.msra.mxu0 0
    %243 = vmatprep.subr.bf16.mxu0 0
    %244 = vmatpush1.bf16.msra.mxu0 0
    %245 = vmatprep.mubr.bf16.mxu0 0
    %246 = vmatmul.mubr.bf16.gmra.mrb[0].mxu0 %v168
    %v247 = vpop.f32.mrb[0].mxu0
    %v248 = vadd.f32 %v117, %v247
    %v249 = vpop.f32.mrb[0].mxu0
    %v250 = vadd.f32 %v121, %v249
    %v251 = vpop.f32.mrb[0].mxu0
    %v252 = vadd.f32 %v117, %v251
    %v253 = vpop.f32.mrb[0].mxu0
    %v254 = vadd.f32 %v121, %v253
    %255 = vdwg.mxu0
    %v256 = vmax.f32 %v205, 0.0
    %v257 = vmax.f32 %v207, 0.0
    %v258 = vmax.f32 %v248, 0.0
    %v259 = vmax.f32 %v250, 0.0
    %v260 = vmax.f32 %v209, 0.0
    %v261 = vmax.f32 %v211, 0.0
    %v262 = vmax.f32 %v252, 0.0
    %v263 = vmax.f32 %v254, 0.0
    %v264 = vpack.c.bf16 %v260, %v256
    %v265 = vpack.c.bf16 %v261, %v257
    %v266 = vpack.c.bf16 %v262, %v258
    %v267 = vpack.c.bf16 %v263, %v259
    %v268 = vld [vmem:[#allocation7] sm:$0xff]
    %v269 = vld [vmem:[#allocation7 + $0x8] sm:$0xff]
    %v270 = vld [vmem:[#allocation7 + $0x10] sm:$0xff]
    %v271 = vld [vmem:[#allocation7 + $0x18] sm:$0xff]
    %v272 = vld [vmem:[#allocation7 + $0x20] sm:$0xff]
    %v273 = vld [vmem:[#allocation7 + $0x28] sm:$0xff]
    %v274 = vld [vmem:[#allocation7 + $0x30] sm:$0xff]
    %v275 = vld [vmem:[#allocation7 + $0x38] sm:$0xff]
    %v276 = vld [vmem:[#allocation7 + $0x40] sm:$0xff]
    %v277 = vld [vmem:[#allocation7 + $0x48] sm:$0xff]
    %v278 = vld [vmem:[#allocation7 + $0x50] sm:$0xff]
    %v279 = vld [vmem:[#allocation7 + $0x58] sm:$0xff]
    %v280 = vld [vmem:[#allocation7 + $0x60] sm:$0xff]
    %v281 = vld [vmem:[#allocation7 + $0x68] sm:$0xff]
    %v282 = vld [vmem:[#allocation7 + $0x70] sm:$0xff]
    %v283 = vld [vmem:[#allocation7 + $0x78] sm:$0xff]
    %v284 = vld [vmem:[#allocation7 + $0x80] sm:$0xff]
    %v285 = vld [vmem:[#allocation7 + $0x88] sm:$0xff]
    %v286 = vld [vmem:[#allocation7 + $0x90] sm:$0xff]
    %v287 = vld [vmem:[#allocation7 + $0x98] sm:$0xff]
    %v288 = vld [vmem:[#allocation7 + $0xa0] sm:$0xff]
    %v289 = vld [vmem:[#allocation7 + $0xa8] sm:$0xff]
    %v290 = vld [vmem:[#allocation7 + $0xb0] sm:$0xff]
    %v291 = vld [vmem:[#allocation7 + $0xb8] sm:$0xff]
    %v292 = vld [vmem:[#allocation7 + $0xc0] sm:$0xff]
    %v293 = vld [vmem:[#allocation7 + $0xc8] sm:$0xff]
    %v294 = vld [vmem:[#allocation7 + $0xd0] sm:$0xff]
    %v295 = vld [vmem:[#allocation7 + $0xd8] sm:$0xff]
    %v296 = vld [vmem:[#allocation7 + $0xe0] sm:$0xff]
    %v297 = vld [vmem:[#allocation7 + $0xe8] sm:$0xff]
    %v298 = vld [vmem:[#allocation7 + $0xf0] sm:$0xff]
    %v299 = vld [vmem:[#allocation7 + $0xf8] sm:$0xff]
    %v300 = vld [vmem:[#allocation7 + $0x100] sm:$0xff]
    %v301 = vld [vmem:[#allocation7 + $0x108] sm:$0xff]
    %v302 = vld [vmem:[#allocation7 + $0x110] sm:$0xff]
    %v303 = vld [vmem:[#allocation7 + $0x118] sm:$0xff]
    %v304 = vld [vmem:[#allocation7 + $0x120] sm:$0xff]
    %v305 = vld [vmem:[#allocation7 + $0x128] sm:$0xff]
    %v306 = vld [vmem:[#allocation7 + $0x130] sm:$0xff]
    %v307 = vld [vmem:[#allocation7 + $0x138] sm:$0xff]
    %v308 = vld [vmem:[#allocation7 + $0x140] sm:$0xff]
    %v309 = vld [vmem:[#allocation7 + $0x148] sm:$0xff]
    %v310 = vld [vmem:[#allocation7 + $0x150] sm:$0xff]
    %v311 = vld [vmem:[#allocation7 + $0x158] sm:$0xff]
    %v312 = vld [vmem:[#allocation7 + $0x160] sm:$0xff]
    %v313 = vld [vmem:[#allocation7 + $0x168] sm:$0xff]
    %v314 = vld [vmem:[#allocation7 + $0x170] sm:$0xff]
    %v315 = vld [vmem:[#allocation7 + $0x178] sm:$0xff]
    %v316 = vld [vmem:[#allocation7 + $0x180] sm:$0xff]
    %v317 = vld [vmem:[#allocation7 + $0x188] sm:$0xff]
    %v318 = vld [vmem:[#allocation7 + $0x190] sm:$0xff]
    %v319 = vld [vmem:[#allocation7 + $0x198] sm:$0xff]
    %v320 = vld [vmem:[#allocation7 + $0x1a0] sm:$0xff]
    %v321 = vld [vmem:[#allocation7 + $0x1a8] sm:$0xff]
    %v322 = vld [vmem:[#allocation7 + $0x1b0] sm:$0xff]
    %v323 = vld [vmem:[#allocation7 + $0x1b8] sm:$0xff]
    %v324 = vld [vmem:[#allocation7 + $0x1c0] sm:$0xff]
    %v325 = vld [vmem:[#allocation7 + $0x1c8] sm:$0xff]
    %v326 = vld [vmem:[#allocation7 + $0x1d0] sm:$0xff]
    %v327 = vld [vmem:[#allocation7 + $0x1d8] sm:$0xff]
    %v328 = vld [vmem:[#allocation7 + $0x1e0] sm:$0xff]
    %v329 = vld [vmem:[#allocation7 + $0x1e8] sm:$0xff]
    %v330 = vld [vmem:[#allocation7 + $0x1f0] sm:$0xff]
    %v331 = vld [vmem:[#allocation7 + $0x1f8] sm:$0xff]
    %v332 = vld [vmem:[#allocation7 + $0x200] sm:$0xff]
    %v333 = vld [vmem:[#allocation7 + $0x208] sm:$0xff]
    %v334 = vld [vmem:[#allocation7 + $0x210] sm:$0xff]
    %v335 = vld [vmem:[#allocation7 + $0x218] sm:$0xff]
    %v336 = vld [vmem:[#allocation7 + $0x220] sm:$0xff]
    %v337 = vld [vmem:[#allocation7 + $0x228] sm:$0xff]
    %v338 = vld [vmem:[#allocation7 + $0x230] sm:$0xff]
    %v339 = vld [vmem:[#allocation7 + $0x238] sm:$0xff]
    %v340 = vld [vmem:[#allocation7 + $0x240] sm:$0xff]
    %v341 = vld [vmem:[#allocation7 + $0x248] sm:$0xff]
    %v342 = vld [vmem:[#allocation7 + $0x250] sm:$0xff]
    %v343 = vld [vmem:[#allocation7 + $0x258] sm:$0xff]
    %v344 = vld [vmem:[#allocation7 + $0x260] sm:$0xff]
    %v345 = vld [vmem:[#allocation7 + $0x268] sm:$0xff]
    %v346 = vld [vmem:[#allocation7 + $0x270] sm:$0xff]
    %v347 = vld [vmem:[#allocation7 + $0x278] sm:$0xff]
    %v348 = vld [vmem:[#allocation7 + $0x280] sm:$0xff]
    %v349 = vld [vmem:[#allocation7 + $0x288] sm:$0xff]
    %v350 = vld [vmem:[#allocation7 + $0x290] sm:$0xff]
    %v351 = vld [vmem:[#allocation7 + $0x298] sm:$0xff]
    %v352 = vld [vmem:[#allocation7 + $0x2a0] sm:$0xff]
    %v353 = vld [vmem:[#allocation7 + $0x2a8] sm:$0xff]
    %v354 = vld [vmem:[#allocation7 + $0x2b0] sm:$0xff]
    %v355 = vld [vmem:[#allocation7 + $0x2b8] sm:$0xff]
    %v356 = vld [vmem:[#allocation7 + $0x2c0] sm:$0xff]
    %v357 = vld [vmem:[#allocation7 + $0x2c8] sm:$0xff]
    %v358 = vld [vmem:[#allocation7 + $0x2d0] sm:$0xff]
    %v359 = vld [vmem:[#allocation7 + $0x2d8] sm:$0xff]
    %v360 = vld [vmem:[#allocation7 + $0x2e0] sm:$0xff]
    %v361 = vld [vmem:[#allocation7 + $0x2e8] sm:$0xff]
    %v362 = vld [vmem:[#allocation7 + $0x2f0] sm:$0xff]
    %v363 = vld [vmem:[#allocation7 + $0x2f8] sm:$0xff]
    %v364 = vld [vmem:[#allocation7 + $0x300] sm:$0xff]
    %v365 = vld [vmem:[#allocation7 + $0x308] sm:$0xff]
    %v366 = vld [vmem:[#allocation7 + $0x310] sm:$0xff]
    %v367 = vld [vmem:[#allocation7 + $0x318] sm:$0xff]
    %v368 = vld [vmem:[#allocation7 + $0x320] sm:$0xff]
    %v369 = vld [vmem:[#allocation7 + $0x328] sm:$0xff]
    %v370 = vld [vmem:[#allocation7 + $0x330] sm:$0xff]
    %v371 = vld [vmem:[#allocation7 + $0x338] sm:$0xff]
    %v372 = vld [vmem:[#allocation7 + $0x340] sm:$0xff]
    %v373 = vld [vmem:[#allocation7 + $0x348] sm:$0xff]
    %v374 = vld [vmem:[#allocation7 + $0x350] sm:$0xff]
    %v375 = vld [vmem:[#allocation7 + $0x358] sm:$0xff]
    %v376 = vld [vmem:[#allocation7 + $0x360] sm:$0xff]
    %v377 = vld [vmem:[#allocation7 + $0x368] sm:$0xff]
    %v378 = vld [vmem:[#allocation7 + $0x370] sm:$0xff]
    %v379 = vld [vmem:[#allocation7 + $0x378] sm:$0xff]
    %v380 = vld [vmem:[#allocation7 + $0x380] sm:$0xff]
    %v381 = vld [vmem:[#allocation7 + $0x388] sm:$0xff]
    %v382 = vld [vmem:[#allocation7 + $0x390] sm:$0xff]
    %v383 = vld [vmem:[#allocation7 + $0x398] sm:$0xff]
    %v384 = vld [vmem:[#allocation7 + $0x3a0] sm:$0xff]
    %v385 = vld [vmem:[#allocation7 + $0x3a8] sm:$0xff]
    %v386 = vld [vmem:[#allocation7 + $0x3b0] sm:$0xff]
    %v387 = vld [vmem:[#allocation7 + $0x3b8] sm:$0xff]
    %v388 = vld [vmem:[#allocation7 + $0x3c0] sm:$0xff]
    %v389 = vld [vmem:[#allocation7 + $0x3c8] sm:$0xff]
    %v390 = vld [vmem:[#allocation7 + $0x3d0] sm:$0xff]
    %v391 = vld [vmem:[#allocation7 + $0x3d8] sm:$0xff]
    %v392 = vld [vmem:[#allocation7 + $0x3e0] sm:$0xff]
    %v393 = vld [vmem:[#allocation7 + $0x3e8] sm:$0xff]
    %v394 = vld [vmem:[#allocation7 + $0x3f0] sm:$0xff]
    %v395 = vld [vmem:[#allocation7 + $0x3f8] sm:$0xff]
    %s396 = scalar_lea.vmem %s5, 1
    %v397 = vld [vmem:[%s396] ss:$4 sm:$0xf]
    %v399 = vlaneseq
    %v400 = vshrl.u32 %v399, 7
    %v401 = vsub.s32 0, %v400
    %v402 = vrot.slane %v397, %v401
    %v403 = vlaneseq
    %v404 = vshrl.u32 %v403, 7
    %v405 = vsub.s32 1, %v404
    %v406 = vrot.slane %v397, %v405
    %v407 = vlaneseq
    %v408 = vshrl.u32 %v407, 7
    %v409 = vsub.s32 2, %v408
    %v410 = vrot.slane %v397, %v409
    %v411 = vlaneseq
    %v412 = vshrl.u32 %v411, 7
    %v413 = vsub.s32 3, %v412
    %v414 = vrot.slane %v397, %v413
    %v547 = vunpack.c.l.b16 %v268
    %v548 = vunpack.c.h.b16 %v268
    %v549 = vunpack.c.l.b16 %v269
    %v550 = vunpack.c.h.b16 %v269
    %v551 = vunpack.c.l.b16 %v270
    %v552 = vunpack.c.h.b16 %v270
    %v553 = vunpack.c.l.b16 %v271
    %v554 = vunpack.c.h.b16 %v271
    %v555 = vunpack.c.l.b16 %v272
    %v556 = vunpack.c.h.b16 %v272
    %v557 = vunpack.c.l.b16 %v273
    %v558 = vunpack.c.h.b16 %v273
    %v559 = vunpack.c.l.b16 %v274
    %v560 = vunpack.c.h.b16 %v274
    %v561 = vunpack.c.l.b16 %v275
    %v562 = vunpack.c.h.b16 %v275
    %v563 = vunpack.c.l.b16 %v276
    %v564 = vunpack.c.h.b16 %v276
    %v565 = vunpack.c.l.b16 %v277
    %v566 = vunpack.c.h.b16 %v277
    %v567 = vunpack.c.l.b16 %v278
    %v568 = vunpack.c.h.b16 %v278
    %v569 = vunpack.c.l.b16 %v279
    %v570 = vunpack.c.h.b16 %v279
    %v571 = vunpack.c.l.b16 %v280
    %v572 = vunpack.c.h.b16 %v280
    %v573 = vunpack.c.l.b16 %v281
    %v574 = vunpack.c.h.b16 %v281
    %v575 = vunpack.c.l.b16 %v282
    %v576 = vunpack.c.h.b16 %v282
    %v577 = vunpack.c.l.b16 %v283
    %v578 = vunpack.c.h.b16 %v283
    %v579 = vunpack.c.l.b16 %v284
    %v580 = vunpack.c.h.b16 %v284
    %v581 = vunpack.c.l.b16 %v285
    %v582 = vunpack.c.h.b16 %v285
    %v583 = vunpack.c.l.b16 %v286
    %v584 = vunpack.c.h.b16 %v286
    %v585 = vunpack.c.l.b16 %v287
    %v586 = vunpack.c.h.b16 %v287
    %v587 = vunpack.c.l.b16 %v288
    %v588 = vunpack.c.h.b16 %v288
    %v589 = vunpack.c.l.b16 %v289
    %v590 = vunpack.c.h.b16 %v289
    %v591 = vunpack.c.l.b16 %v290
    %v592 = vunpack.c.h.b16 %v290
    %v593 = vunpack.c.l.b16 %v291
    %v594 = vunpack.c.h.b16 %v291
    %v595 = vunpack.c.l.b16 %v292
    %v596 = vunpack.c.h.b16 %v292
    %v597 = vunpack.c.l.b16 %v293
    %v598 = vunpack.c.h.b16 %v293
    %v599 = vunpack.c.l.b16 %v294
    %v600 = vunpack.c.h.b16 %v294
    %v601 = vunpack.c.l.b16 %v295
    %v602 = vunpack.c.h.b16 %v295
    %v603 = vunpack.c.l.b16 %v296
    %v604 = vunpack.c.h.b16 %v296
    %v605 = vunpack.c.l.b16 %v297
    %v606 = vunpack.c.h.b16 %v297
    %v607 = vunpack.c.l.b16 %v298
    %v608 = vunpack.c.h.b16 %v298
    %v609 = vunpack.c.l.b16 %v299
    %v610 = vunpack.c.h.b16 %v299
    %v611 = vunpack.c.l.b16 %v300
    %v612 = vunpack.c.h.b16 %v300
    %v613 = vunpack.c.l.b16 %v301
    %v614 = vunpack.c.h.b16 %v301
    %v615 = vunpack.c.l.b16 %v302
    %v616 = vunpack.c.h.b16 %v302
    %v617 = vunpack.c.l.b16 %v303
    %v618 = vunpack.c.h.b16 %v303
    %v619 = vunpack.c.l.b16 %v304
    %v620 = vunpack.c.h.b16 %v304
    %v621 = vunpack.c.l.b16 %v305
    %v622 = vunpack.c.h.b16 %v305
    %v623 = vunpack.c.l.b16 %v306
    %v624 = vunpack.c.h.b16 %v306
    %v625 = vunpack.c.l.b16 %v307
    %v626 = vunpack.c.h.b16 %v307
    %v627 = vunpack.c.l.b16 %v308
    %v628 = vunpack.c.h.b16 %v308
    %v629 = vunpack.c.l.b16 %v309
    %v630 = vunpack.c.h.b16 %v309
    %v631 = vunpack.c.l.b16 %v310
    %v632 = vunpack.c.h.b16 %v310
    %v633 = vunpack.c.l.b16 %v311
    %v634 = vunpack.c.h.b16 %v311
    %v635 = vunpack.c.l.b16 %v312
    %v636 = vunpack.c.h.b16 %v312
    %v637 = vunpack.c.l.b16 %v313
    %v638 = vunpack.c.h.b16 %v313
    %v639 = vunpack.c.l.b16 %v314
    %v640 = vunpack.c.h.b16 %v314
    %v641 = vunpack.c.l.b16 %v315
    %v642 = vunpack.c.h.b16 %v315
    %v643 = vunpack.c.l.b16 %v316
    %v644 = vunpack.c.h.b16 %v316
    %v645 = vunpack.c.l.b16 %v317
    %v646 = vunpack.c.h.b16 %v317
    %v647 = vunpack.c.l.b16 %v318
    %v648 = vunpack.c.h.b16 %v318
    %v649 = vunpack.c.l.b16 %v319
    %v650 = vunpack.c.h.b16 %v319
    %v651 = vunpack.c.l.b16 %v320
    %v652 = vunpack.c.h.b16 %v320
    %v653 = vunpack.c.l.b16 %v321
    %v654 = vunpack.c.h.b16 %v321
    %v655 = vunpack.c.l.b16 %v322
    %v656 = vunpack.c.h.b16 %v322
    %v657 = vunpack.c.l.b16 %v323
    %v658 = vunpack.c.h.b16 %v323
    %v659 = vunpack.c.l.b16 %v324
    %v660 = vunpack.c.h.b16 %v324
    %v661 = vunpack.c.l.b16 %v325
    %v662 = vunpack.c.h.b16 %v325
    %v663 = vunpack.c.l.b16 %v326
    %v664 = vunpack.c.h.b16 %v326
    %v665 = vunpack.c.l.b16 %v327
    %v666 = vunpack.c.h.b16 %v327
    %v667 = vunpack.c.l.b16 %v328
    %v668 = vunpack.c.h.b16 %v328
    %v669 = vunpack.c.l.b16 %v329
    %v670 = vunpack.c.h.b16 %v329
    %v671 = vunpack.c.l.b16 %v330
    %v672 = vunpack.c.h.b16 %v330
    %v673 = vunpack.c.l.b16 %v331
    %v674 = vunpack.c.h.b16 %v331
    %v675 = vunpack.c.l.b16 %v332
    %v676 = vunpack.c.h.b16 %v332
    %v677 = vunpack.c.l.b16 %v333
    %v678 = vunpack.c.h.b16 %v333
    %v679 = vunpack.c.l.b16 %v334
    %v680 = vunpack.c.h.b16 %v334
    %v681 = vunpack.c.l.b16 %v335
    %v682 = vunpack.c.h.b16 %v335
    %v683 = vunpack.c.l.b16 %v336
    %v684 = vunpack.c.h.b16 %v336
    %v685 = vunpack.c.l.b16 %v337
    %v686 = vunpack.c.h.b16 %v337
    %v687 = vunpack.c.l.b16 %v338
    %v688 = vunpack.c.h.b16 %v338
    %v689 = vunpack.c.l.b16 %v339
    %v690 = vunpack.c.h.b16 %v339
    %v691 = vunpack.c.l.b16 %v340
    %v692 = vunpack.c.h.b16 %v340
    %v693 = vunpack.c.l.b16 %v341
    %v694 = vunpack.c.h.b16 %v341
    %v695 = vunpack.c.l.b16 %v342
    %v696 = vunpack.c.h.b16 %v342
    %v697 = vunpack.c.l.b16 %v343
    %v698 = vunpack.c.h.b16 %v343
    %v699 = vunpack.c.l.b16 %v344
    %v700 = vunpack.c.h.b16 %v344
    %v701 = vunpack.c.l.b16 %v345
    %v702 = vunpack.c.h.b16 %v345
    %v703 = vunpack.c.l.b16 %v346
    %v704 = vunpack.c.h.b16 %v346
    %v705 = vunpack.c.l.b16 %v347
    %v706 = vunpack.c.h.b16 %v347
    %v707 = vunpack.c.l.b16 %v348
    %v708 = vunpack.c.h.b16 %v348
    %v709 = vunpack.c.l.b16 %v349
    %v710 = vunpack.c.h.b16 %v349
    %v711 = vunpack.c.l.b16 %v350
    %v712 = vunpack.c.h.b16 %v350
    %v713 = vunpack.c.l.b16 %v351
    %v714 = vunpack.c.h.b16 %v351
    %v715 = vunpack.c.l.b16 %v352
    %v716 = vunpack.c.h.b16 %v352
    %v717 = vunpack.c.l.b16 %v353
    %v718 = vunpack.c.h.b16 %v353
    %v719 = vunpack.c.l.b16 %v354
    %v720 = vunpack.c.h.b16 %v354
    %v721 = vunpack.c.l.b16 %v355
    %v722 = vunpack.c.h.b16 %v355
    %v723 = vunpack.c.l.b16 %v356
    %v724 = vunpack.c.h.b16 %v356
    %v725 = vunpack.c.l.b16 %v357
    %v726 = vunpack.c.h.b16 %v357
    %v727 = vunpack.c.l.b16 %v358
    %v728 = vunpack.c.h.b16 %v358
    %v729 = vunpack.c.l.b16 %v359
    %v730 = vunpack.c.h.b16 %v359
    %v731 = vunpack.c.l.b16 %v360
    %v732 = vunpack.c.h.b16 %v360
    %v733 = vunpack.c.l.b16 %v361
    %v734 = vunpack.c.h.b16 %v361
    %v735 = vunpack.c.l.b16 %v362
    %v736 = vunpack.c.h.b16 %v362
    %v737 = vunpack.c.l.b16 %v363
    %v738 = vunpack.c.h.b16 %v363
    %v739 = vunpack.c.l.b16 %v364
    %v740 = vunpack.c.h.b16 %v364
    %v741 = vunpack.c.l.b16 %v365
    %v742 = vunpack.c.h.b16 %v365
    %v743 = vunpack.c.l.b16 %v366
    %v744 = vunpack.c.h.b16 %v366
    %v745 = vunpack.c.l.b16 %v367
    %v746 = vunpack.c.h.b16 %v367
    %v747 = vunpack.c.l.b16 %v368
    %v748 = vunpack.c.h.b16 %v368
    %v749 = vunpack.c.l.b16 %v369
    %v750 = vunpack.c.h.b16 %v369
    %v751 = vunpack.c.l.b16 %v370
    %v752 = vunpack.c.h.b16 %v370
    %v753 = vunpack.c.l.b16 %v371
    %v754 = vunpack.c.h.b16 %v371
    %v755 = vunpack.c.l.b16 %v372
    %v756 = vunpack.c.h.b16 %v372
    %v757 = vunpack.c.l.b16 %v373
    %v758 = vunpack.c.h.b16 %v373
    %v759 = vunpack.c.l.b16 %v374
    %v760 = vunpack.c.h.b16 %v374
    %v761 = vunpack.c.l.b16 %v375
    %v762 = vunpack.c.h.b16 %v375
    %v763 = vunpack.c.l.b16 %v376
    %v764 = vunpack.c.h.b16 %v376
    %v765 = vunpack.c.l.b16 %v377
    %v766 = vunpack.c.h.b16 %v377
    %v767 = vunpack.c.l.b16 %v378
    %v768 = vunpack.c.h.b16 %v378
    %v769 = vunpack.c.l.b16 %v379
    %v770 = vunpack.c.h.b16 %v379
    %v771 = vunpack.c.l.b16 %v380
    %v772 = vunpack.c.h.b16 %v380
    %v773 = vunpack.c.l.b16 %v381
    %v774 = vunpack.c.h.b16 %v381
    %v775 = vunpack.c.l.b16 %v382
    %v776 = vunpack.c.h.b16 %v382
    %v777 = vunpack.c.l.b16 %v383
    %v778 = vunpack.c.h.b16 %v383
    %v779 = vunpack.c.l.b16 %v384
    %v780 = vunpack.c.h.b16 %v384
    %v781 = vunpack.c.l.b16 %v385
    %v782 = vunpack.c.h.b16 %v385
    %v783 = vunpack.c.l.b16 %v386
    %v784 = vunpack.c.h.b16 %v386
    %v785 = vunpack.c.l.b16 %v387
    %v786 = vunpack.c.h.b16 %v387
    %v787 = vunpack.c.l.b16 %v388
    %v788 = vunpack.c.h.b16 %v388
    %v789 = vunpack.c.l.b16 %v389
    %v790 = vunpack.c.h.b16 %v389
    %v791 = vunpack.c.l.b16 %v390
    %v792 = vunpack.c.h.b16 %v390
    %v793 = vunpack.c.l.b16 %v391
    %v794 = vunpack.c.h.b16 %v391
    %v795 = vunpack.c.l.b16 %v392
    %v796 = vunpack.c.h.b16 %v392
    %v797 = vunpack.c.l.b16 %v393
    %v798 = vunpack.c.h.b16 %v393
    %v799 = vunpack.c.l.b16 %v394
    %v800 = vunpack.c.h.b16 %v394
    %v801 = vunpack.c.l.b16 %v395
    %v802 = vunpack.c.h.b16 %v395
    %v803 = vpack.c.b16 %v551, %v547
    %v804 = vpack.c.b16 %v552, %v548
    %v805 = vpack.c.b16 %v553, %v549
    %v806 = vpack.c.b16 %v554, %v550
    %v807 = vpack.c.b16 %v559, %v555
    %v808 = vpack.c.b16 %v560, %v556
    %v809 = vpack.c.b16 %v561, %v557
    %v810 = vpack.c.b16 %v562, %v558
    %v811 = vpack.c.b16 %v567, %v563
    %v812 = vpack.c.b16 %v568, %v564
    %v813 = vpack.c.b16 %v569, %v565
    %v814 = vpack.c.b16 %v570, %v566
    %v815 = vpack.c.b16 %v575, %v571
    %v816 = vpack.c.b16 %v576, %v572
    %v817 = vpack.c.b16 %v577, %v573
    %v818 = vpack.c.b16 %v578, %v574
    %v819 = vpack.c.b16 %v583, %v579
    %v820 = vpack.c.b16 %v584, %v580
    %v821 = vpack.c.b16 %v585, %v581
    %v822 = vpack.c.b16 %v586, %v582
    %v823 = vpack.c.b16 %v591, %v587
    %v824 = vpack.c.b16 %v592, %v588
    %v825 = vpack.c.b16 %v593, %v589
    %v826 = vpack.c.b16 %v594, %v590
    %v827 = vpack.c.b16 %v599, %v595
    %v828 = vpack.c.b16 %v600, %v596
    %v829 = vpack.c.b16 %v601, %v597
    %v830 = vpack.c.b16 %v602, %v598
    %v831 = vpack.c.b16 %v607, %v603
    %v832 = vpack.c.b16 %v608, %v604
    %v833 = vpack.c.b16 %v609, %v605
    %v834 = vpack.c.b16 %v610, %v606
    %v835 = vpack.c.b16 %v615, %v611
    %v836 = vpack.c.b16 %v616, %v612
    %v837 = vpack.c.b16 %v617, %v613
    %v838 = vpack.c.b16 %v618, %v614
    %v839 = vpack.c.b16 %v623, %v619
    %v840 = vpack.c.b16 %v624, %v620
    %v841 = vpack.c.b16 %v625, %v621
    %v842 = vpack.c.b16 %v626, %v622
    %v843 = vpack.c.b16 %v631, %v627
    %v844 = vpack.c.b16 %v632, %v628
    %v845 = vpack.c.b16 %v633, %v629
    %v846 = vpack.c.b16 %v634, %v630
    %v847 = vpack.c.b16 %v639, %v635
    %v848 = vpack.c.b16 %v640, %v636
    %v849 = vpack.c.b16 %v641, %v637
    %v850 = vpack.c.b16 %v642, %v638
    %v851 = vpack.c.b16 %v647, %v643
    %v852 = vpack.c.b16 %v648, %v644
    %v853 = vpack.c.b16 %v649, %v645
    %v854 = vpack.c.b16 %v650, %v646
    %v855 = vpack.c.b16 %v655, %v651
    %v856 = vpack.c.b16 %v656, %v652
    %v857 = vpack.c.b16 %v657, %v653
    %v858 = vpack.c.b16 %v658, %v654
    %v859 = vpack.c.b16 %v663, %v659
    %v860 = vpack.c.b16 %v664, %v660
    %v861 = vpack.c.b16 %v665, %v661
    %v862 = vpack.c.b16 %v666, %v662
    %v863 = vpack.c.b16 %v671, %v667
    %v864 = vpack.c.b16 %v672, %v668
    %v865 = vpack.c.b16 %v673, %v669
    %v866 = vpack.c.b16 %v674, %v670
    %v867 = vpack.c.b16 %v679, %v675
    %v868 = vpack.c.b16 %v680, %v676
    %v869 = vpack.c.b16 %v681, %v677
    %v870 = vpack.c.b16 %v682, %v678
    %v871 = vpack.c.b16 %v687, %v683
    %v872 = vpack.c.b16 %v688, %v684
    %v873 = vpack.c.b16 %v689, %v685
    %v874 = vpack.c.b16 %v690, %v686
    %v875 = vpack.c.b16 %v695, %v691
    %v876 = vpack.c.b16 %v696, %v692
    %v877 = vpack.c.b16 %v697, %v693
    %v878 = vpack.c.b16 %v698, %v694
    %v879 = vpack.c.b16 %v703, %v699
    %v880 = vpack.c.b16 %v704, %v700
    %v881 = vpack.c.b16 %v705, %v701
    %v882 = vpack.c.b16 %v706, %v702
    %v883 = vpack.c.b16 %v711, %v707
    %v884 = vpack.c.b16 %v712, %v708
    %v885 = vpack.c.b16 %v713, %v709
    %v886 = vpack.c.b16 %v714, %v710
    %v887 = vpack.c.b16 %v719, %v715
    %v888 = vpack.c.b16 %v720, %v716
    %v889 = vpack.c.b16 %v721, %v717
    %v890 = vpack.c.b16 %v722, %v718
    %v891 = vpack.c.b16 %v727, %v723
    %v892 = vpack.c.b16 %v728, %v724
    %v893 = vpack.c.b16 %v729, %v725
    %v894 = vpack.c.b16 %v730, %v726
    %v895 = vpack.c.b16 %v735, %v731
    %v896 = vpack.c.b16 %v736, %v732
    %v897 = vpack.c.b16 %v737, %v733
    %v898 = vpack.c.b16 %v738, %v734
    %v899 = vpack.c.b16 %v743, %v739
    %v900 = vpack.c.b16 %v744, %v740
    %v901 = vpack.c.b16 %v745, %v741
    %v902 = vpack.c.b16 %v746, %v742
    %v903 = vpack.c.b16 %v751, %v747
    %v904 = vpack.c.b16 %v752, %v748
    %v905 = vpack.c.b16 %v753, %v749
    %v906 = vpack.c.b16 %v754, %v750
    %v907 = vpack.c.b16 %v759, %v755
    %v908 = vpack.c.b16 %v760, %v756
    %v909 = vpack.c.b16 %v761, %v757
    %v910 = vpack.c.b16 %v762, %v758
    %v911 = vpack.c.b16 %v767, %v763
    %v912 = vpack.c.b16 %v768, %v764
    %v913 = vpack.c.b16 %v769, %v765
    %v914 = vpack.c.b16 %v770, %v766
    %v915 = vpack.c.b16 %v775, %v771
    %v916 = vpack.c.b16 %v776, %v772
    %v917 = vpack.c.b16 %v777, %v773
    %v918 = vpack.c.b16 %v778, %v774
    %v919 = vpack.c.b16 %v783, %v779
    %v920 = vpack.c.b16 %v784, %v780
    %v921 = vpack.c.b16 %v785, %v781
    %v922 = vpack.c.b16 %v786, %v782
    %v923 = vpack.c.b16 %v791, %v787
    %v924 = vpack.c.b16 %v792, %v788
    %v925 = vpack.c.b16 %v793, %v789
    %v926 = vpack.c.b16 %v794, %v790
    %v927 = vpack.c.b16 %v799, %v795
    %v928 = vpack.c.b16 %v800, %v796
    %v929 = vpack.c.b16 %v801, %v797
    %v930 = vpack.c.b16 %v802, %v798
    %1059 = vmatprep.subr.bf16.mxu0 %v804
    %1060 = vmatpush1.bf16.msra.mxu0 %v803
    %1061 = vmatprep.subr.bf16.mxu0 %v808
    %1062 = vmatpush1.bf16.msra.mxu0 %v807
    %1063 = vmatprep.subr.bf16.mxu0 %v812
    %1064 = vmatpush1.bf16.msra.mxu0 %v811
    %1065 = vmatprep.subr.bf16.mxu0 %v816
    %1066 = vmatpush1.bf16.msra.mxu0 %v815
    %1067 = vmatprep.subr.bf16.mxu0 %v820
    %1068 = vmatpush1.bf16.msra.mxu0 %v819
    %1069 = vmatprep.subr.bf16.mxu0 %v824
    %1070 = vmatpush1.bf16.msra.mxu0 %v823
    %1071 = vmatprep.subr.bf16.mxu0 %v828
    %1072 = vmatpush1.bf16.msra.mxu0 %v827
    %1073 = vmatprep.subr.bf16.mxu0 %v832
    %1074 = vmatpush1.bf16.msra.mxu0 %v831
    %1075 = vmatprep.subr.bf16.mxu0 %v836
    %1076 = vmatpush1.bf16.msra.mxu0 %v835
    %1077 = vmatprep.subr.bf16.mxu0 %v840
    %1078 = vmatpush1.bf16.msra.mxu0 %v839
    %1079 = vmatprep.subr.bf16.mxu0 %v844
    %1080 = vmatpush1.bf16.msra.mxu0 %v843
    %1081 = vmatprep.subr.bf16.mxu0 %v848
    %1082 = vmatpush1.bf16.msra.mxu0 %v847
    %1083 = vmatprep.subr.bf16.mxu0 %v852
    %1084 = vmatpush1.bf16.msra.mxu0 %v851
    %1085 = vmatprep.subr.bf16.mxu0 %v856
    %1086 = vmatpush1.bf16.msra.mxu0 %v855
    %1087 = vmatprep.subr.bf16.mxu0 %v860
    %1088 = vmatpush1.bf16.msra.mxu0 %v859
    %1089 = vmatprep.subr.bf16.mxu0 %v864
    %1090 = vmatpush1.bf16.msra.mxu0 %v863
    %1091 = vmatprep.mubr.bf16.mxu0 %v265
    %1092 = vmatmul.mubr.bf16.gmra.mrb[0].mxu0 %v264
    %v1093 = vpop.f32.mrb[0].mxu0
    %v1094 = vadd.f32 %v402, %v1093
    %v1095 = vpop.f32.mrb[0].mxu0
    %v1096 = vadd.f32 %v406, %v1095
    %v1097 = vpop.f32.mrb[0].mxu0
    %v1098 = vadd.f32 %v402, %v1097
    %v1099 = vpop.f32.mrb[0].mxu0
    %v1100 = vadd.f32 %v406, %v1099
    %1101 = vdwg.mxu0
    %1102 = vmatprep.subr.bf16.mxu0 %v868
    %1103 = vmatpush1.bf16.msra.mxu0 %v867
    %1104 = vmatprep.subr.bf16.mxu0 %v872
    %1105 = vmatpush1.bf16.msra.mxu0 %v871
    %1106 = vmatprep.subr.bf16.mxu0 %v876
    %1107 = vmatpush1.bf16.msra.mxu0 %v875
    %1108 = vmatprep.subr.bf16.mxu0 %v880
    %1109 = vmatpush1.bf16.msra.mxu0 %v879
    %1110 = vmatprep.subr.bf16.mxu0 %v884
    %1111 = vmatpush1.bf16.msra.mxu0 %v883
    %1112 = vmatprep.subr.bf16.mxu0 %v888
    %1113 = vmatpush1.bf16.msra.mxu0 %v887
    %1114 = vmatprep.subr.bf16.mxu0 %v892
    %1115 = vmatpush1.bf16.msra.mxu0 %v891
    %1116 = vmatprep.subr.bf16.mxu0 %v896
    %1117 = vmatpush1.bf16.msra.mxu0 %v895
    %1118 = vmatprep.subr.bf16.mxu0 %v900
    %1119 = vmatpush1.bf16.msra.mxu0 %v899
    %1120 = vmatprep.subr.bf16.mxu0 %v904
    %1121 = vmatpush1.bf16.msra.mxu0 %v903
    %1122 = vmatprep.subr.bf16.mxu0 %v908
    %1123 = vmatpush1.bf16.msra.mxu0 %v907
    %1124 = vmatprep.subr.bf16.mxu0 %v912
    %1125 = vmatpush1.bf16.msra.mxu0 %v911
    %1126 = vmatprep.subr.bf16.mxu0 %v916
    %1127 = vmatpush1.bf16.msra.mxu0 %v915
    %1128 = vmatprep.subr.bf16.mxu0 %v920
    %1129 = vmatpush1.bf16.msra.mxu0 %v919
    %1130 = vmatprep.subr.bf16.mxu0 %v924
    %1131 = vmatpush1.bf16.msra.mxu0 %v923
    %1132 = vmatprep.subr.bf16.mxu0 %v928
    %1133 = vmatpush1.bf16.msra.mxu0 %v927
    %1134 = vmatprep.mubr.bf16.mxu0 %v267
    %1135 = vmatmul.mubr.bf16.gmra.mrb[0].mxu0 %v266
    %v1136 = vpop.f32.mrb[0].mxu0
    %v1137 = vadd.f32 %v1094, %v1136
    %v1138 = vpop.f32.mrb[0].mxu0
    %v1139 = vadd.f32 %v1096, %v1138
    %v1140 = vpop.f32.mrb[0].mxu0
    %v1141 = vadd.f32 %v1098, %v1140
    %v1142 = vpop.f32.mrb[0].mxu0
    %v1143 = vadd.f32 %v1100, %v1142
    %1144 = vdwg.mxu0
    %1145 = vmatprep.subr.bf16.mxu0 %v806
    %1146 = vmatpush1.bf16.msra.mxu0 %v805
    %1147 = vmatprep.subr.bf16.mxu0 %v810
    %1148 = vmatpush1.bf16.msra.mxu0 %v809
    %1149 = vmatprep.subr.bf16.mxu0 %v814
    %1150 = vmatpush1.bf16.msra.mxu0 %v813
    %1151 = vmatprep.subr.bf16.mxu0 %v818
    %1152 = vmatpush1.bf16.msra.mxu0 %v817
    %1153 = vmatprep.subr.bf16.mxu0 %v822
    %1154 = vmatpush1.bf16.msra.mxu0 %v821
    %1155 = vmatprep.subr.bf16.mxu0 %v826
    %1156 = vmatpush1.bf16.msra.mxu0 %v825
    %1157 = vmatprep.subr.bf16.mxu0 %v830
    %1158 = vmatpush1.bf16.msra.mxu0 %v829
    %1159 = vmatprep.subr.bf16.mxu0 %v834
    %1160 = vmatpush1.bf16.msra.mxu0 %v833
    %1161 = vmatprep.subr.bf16.mxu0 %v838
    %1162 = vmatpush1.bf16.msra.mxu0 %v837
    %1163 = vmatprep.subr.bf16.mxu0 %v842
    %1164 = vmatpush1.bf16.msra.mxu0 %v841
    %1165 = vmatprep.subr.bf16.mxu0 %v846
    %1166 = vmatpush1.bf16.msra.mxu0 %v845
    %1167 = vmatprep.subr.bf16.mxu0 %v850
    %1168 = vmatpush1.bf16.msra.mxu0 %v849
    %1169 = vmatprep.subr.bf16.mxu0 %v854
    %1170 = vmatpush1.bf16.msra.mxu0 %v853
    %1171 = vmatprep.subr.bf16.mxu0 %v858
    %1172 = vmatpush1.bf16.msra.mxu0 %v857
    %1173 = vmatprep.subr.bf16.mxu0 %v862
    %1174 = vmatpush1.bf16.msra.mxu0 %v861
    %1175 = vmatprep.subr.bf16.mxu0 %v866
    %1176 = vmatpush1.bf16.msra.mxu0 %v865
    %1177 = vmatprep.mubr.bf16.mxu0 %v265
    %1178 = vmatmul.mubr.bf16.gmra.mrb[0].mxu0 %v264
    %v1179 = vpop.f32.mrb[0].mxu0
    %v1180 = vadd.f32 %v410, %v1179
    %v1181 = vpop.f32.mrb[0].mxu0
    %v1182 = vadd.f32 %v414, %v1181
    %v1183 = vpop.f32.mrb[0].mxu0
    %v1184 = vadd.f32 %v410, %v1183
    %v1185 = vpop.f32.mrb[0].mxu0
    %v1186 = vadd.f32 %v414, %v1185
    %1187 = vdwg.mxu0
    %1188 = vmatprep.subr.bf16.mxu0 %v870
    %1189 = vmatpush1.bf16.msra.mxu0 %v869
    %1190 = vmatprep.subr.bf16.mxu0 %v874
    %1191 = vmatpush1.bf16.msra.mxu0 %v873
    %1192 = vmatprep.subr.bf16.mxu0 %v878
    %1193 = vmatpush1.bf16.msra.mxu0 %v877
    %1194 = vmatprep.subr.bf16.mxu0 %v882
    %1195 = vmatpush1.bf16.msra.mxu0 %v881
    %1196 = vmatprep.subr.bf16.mxu0 %v886
    %1197 = vmatpush1.bf16.msra.mxu0 %v885
    %1198 = vmatprep.subr.bf16.mxu0 %v890
    %1199 = vmatpush1.bf16.msra.mxu0 %v889
    %1200 = vmatprep.subr.bf16.mxu0 %v894
    %1201 = vmatpush1.bf16.msra.mxu0 %v893
    %1202 = vmatprep.subr.bf16.mxu0 %v898
    %1203 = vmatpush1.bf16.msra.mxu0 %v897
    %1204 = vmatprep.subr.bf16.mxu0 %v902
    %1205 = vmatpush1.bf16.msra.mxu0 %v901
    %1206 = vmatprep.subr.bf16.mxu0 %v906
    %1207 = vmatpush1.bf16.msra.mxu0 %v905
    %1208 = vmatprep.subr.bf16.mxu0 %v910
    %1209 = vmatpush1.bf16.msra.mxu0 %v909
    %1210 = vmatprep.subr.bf16.mxu0 %v914
    %1211 = vmatpush1.bf16.msra.mxu0 %v913
    %1212 = vmatprep.subr.bf16.mxu0 %v918
    %1213 = vmatpush1.bf16.msra.mxu0 %v917
    %1214 = vmatprep.subr.bf16.mxu0 %v922
    %1215 = vmatpush1.bf16.msra.mxu0 %v921
    %1216 = vmatprep.subr.bf16.mxu0 %v926
    %1217 = vmatpush1.bf16.msra.mxu0 %v925
    %1218 = vmatprep.subr.bf16.mxu0 %v930
    %1219 = vmatpush1.bf16.msra.mxu0 %v929
    %1220 = vmatprep.mubr.bf16.mxu0 %v267
    %1221 = vmatmul.mubr.bf16.gmra.mrb[0].mxu0 %v266
    %v1222 = vpop.f32.mrb[0].mxu0
    %v1223 = vadd.f32 %v1180, %v1222
    %v1224 = vpop.f32.mrb[0].mxu0
    %v1225 = vadd.f32 %v1182, %v1224
    %v1226 = vpop.f32.mrb[0].mxu0
    %v1227 = vadd.f32 %v1184, %v1226
    %v1228 = vpop.f32.mrb[0].mxu0
    %v1229 = vadd.f32 %v1186, %v1228
    %1230 = vdwg.mxu0
    %v1231 = vmax.f32 %v1137, 0.0
    %v1232 = vmax.f32 %v1139, 0.0
    %v1233 = vmax.f32 %v1223, 0.0
    %v1234 = vmax.f32 %v1225, 0.0
    %v1235 = vmax.f32 %v1141, 0.0
    %v1236 = vmax.f32 %v1143, 0.0
    %v1237 = vmax.f32 %v1227, 0.0
    %v1238 = vmax.f32 %v1229, 0.0
    %v1239 = vpack.c.bf16 %v1235, %v1231
    %v1240 = vpack.c.bf16 %v1236, %v1232
    %v1241 = vpack.c.bf16 %v1237, %v1233
    %v1242 = vpack.c.bf16 %v1238, %v1234
    %v1243 = vld [vmem:[#allocation8] sm:$0xff]
    %v1244 = vld [vmem:[#allocation8 + $0x8] sm:$0xff]
    %v1245 = vld [vmem:[#allocation8 + $0x10] sm:$0xff]
    %v1246 = vld [vmem:[#allocation8 + $0x18] sm:$0xff]
    %v1247 = vld [vmem:[#allocation8 + $0x20] sm:$0xff]
    %v1248 = vld [vmem:[#allocation8 + $0x28] sm:$0xff]
    %v1249 = vld [vmem:[#allocation8 + $0x30] sm:$0xff]
    %v1250 = vld [vmem:[#allocation8 + $0x38] sm:$0xff]
    %v1251 = vld [vmem:[#allocation8 + $0x40] sm:$0xff]
    %v1252 = vld [vmem:[#allocation8 + $0x48] sm:$0xff]
    %v1253 = vld [vmem:[#allocation8 + $0x50] sm:$0xff]
    %v1254 = vld [vmem:[#allocation8 + $0x58] sm:$0xff]
    %v1255 = vld [vmem:[#allocation8 + $0x60] sm:$0xff]
    %v1256 = vld [vmem:[#allocation8 + $0x68] sm:$0xff]
    %v1257 = vld [vmem:[#allocation8 + $0x70] sm:$0xff]
    %v1258 = vld [vmem:[#allocation8 + $0x78] sm:$0xff]
    %v1259 = vld [vmem:[#allocation8 + $0x80] sm:$0xff]
    %v1260 = vld [vmem:[#allocation8 + $0x88] sm:$0xff]
    %v1261 = vld [vmem:[#allocation8 + $0x90] sm:$0xff]
    %v1262 = vld [vmem:[#allocation8 + $0x98] sm:$0xff]
    %v1263 = vld [vmem:[#allocation8 + $0xa0] sm:$0xff]
    %v1264 = vld [vmem:[#allocation8 + $0xa8] sm:$0xff]
    %v1265 = vld [vmem:[#allocation8 + $0xb0] sm:$0xff]
    %v1266 = vld [vmem:[#allocation8 + $0xb8] sm:$0xff]
    %v1267 = vld [vmem:[#allocation8 + $0xc0] sm:$0xff]
    %v1268 = vld [vmem:[#allocation8 + $0xc8] sm:$0xff]
    %v1269 = vld [vmem:[#allocation8 + $0xd0] sm:$0xff]
    %v1270 = vld [vmem:[#allocation8 + $0xd8] sm:$0xff]
    %v1271 = vld [vmem:[#allocation8 + $0xe0] sm:$0xff]
    %v1272 = vld [vmem:[#allocation8 + $0xe8] sm:$0xff]
    %v1273 = vld [vmem:[#allocation8 + $0xf0] sm:$0xff]
    %v1274 = vld [vmem:[#allocation8 + $0xf8] sm:$0xff]
    %v1275 = vld [vmem:[#allocation8 + $0x100] sm:$0xff]
    %v1276 = vld [vmem:[#allocation8 + $0x108] sm:$0xff]
    %v1277 = vld [vmem:[#allocation8 + $0x110] sm:$0xff]
    %v1278 = vld [vmem:[#allocation8 + $0x118] sm:$0xff]
    %v1279 = vld [vmem:[#allocation8 + $0x120] sm:$0xff]
    %v1280 = vld [vmem:[#allocation8 + $0x128] sm:$0xff]
    %v1281 = vld [vmem:[#allocation8 + $0x130] sm:$0xff]
    %v1282 = vld [vmem:[#allocation8 + $0x138] sm:$0xff]
    %v1283 = vld [vmem:[#allocation8 + $0x140] sm:$0xff]
    %v1284 = vld [vmem:[#allocation8 + $0x148] sm:$0xff]
    %v1285 = vld [vmem:[#allocation8 + $0x150] sm:$0xff]
    %v1286 = vld [vmem:[#allocation8 + $0x158] sm:$0xff]
    %v1287 = vld [vmem:[#allocation8 + $0x160] sm:$0xff]
    %v1288 = vld [vmem:[#allocation8 + $0x168] sm:$0xff]
    %v1289 = vld [vmem:[#allocation8 + $0x170] sm:$0xff]
    %v1290 = vld [vmem:[#allocation8 + $0x178] sm:$0xff]
    %v1291 = vld [vmem:[#allocation8 + $0x180] sm:$0xff]
    %v1292 = vld [vmem:[#allocation8 + $0x188] sm:$0xff]
    %v1293 = vld [vmem:[#allocation8 + $0x190] sm:$0xff]
    %v1294 = vld [vmem:[#allocation8 + $0x198] sm:$0xff]
    %v1295 = vld [vmem:[#allocation8 + $0x1a0] sm:$0xff]
    %v1296 = vld [vmem:[#allocation8 + $0x1a8] sm:$0xff]
    %v1297 = vld [vmem:[#allocation8 + $0x1b0] sm:$0xff]
    %v1298 = vld [vmem:[#allocation8 + $0x1b8] sm:$0xff]
    %v1299 = vld [vmem:[#allocation8 + $0x1c0] sm:$0xff]
    %v1300 = vld [vmem:[#allocation8 + $0x1c8] sm:$0xff]
    %v1301 = vld [vmem:[#allocation8 + $0x1d0] sm:$0xff]
    %v1302 = vld [vmem:[#allocation8 + $0x1d8] sm:$0xff]
    %v1303 = vld [vmem:[#allocation8 + $0x1e0] sm:$0xff]
    %v1304 = vld [vmem:[#allocation8 + $0x1e8] sm:$0xff]
    %v1305 = vld [vmem:[#allocation8 + $0x1f0] sm:$0xff]
    %v1306 = vld [vmem:[#allocation8 + $0x1f8] sm:$0xff]
    %v1307 = vld [vmem:[#allocation8 + $0x200] sm:$0xff]
    %v1308 = vld [vmem:[#allocation8 + $0x208] sm:$0xff]
    %v1309 = vld [vmem:[#allocation8 + $0x210] sm:$0xff]
    %v1310 = vld [vmem:[#allocation8 + $0x218] sm:$0xff]
    %v1311 = vld [vmem:[#allocation8 + $0x220] sm:$0xff]
    %v1312 = vld [vmem:[#allocation8 + $0x228] sm:$0xff]
    %v1313 = vld [vmem:[#allocation8 + $0x230] sm:$0xff]
    %v1314 = vld [vmem:[#allocation8 + $0x238] sm:$0xff]
    %v1315 = vld [vmem:[#allocation8 + $0x240] sm:$0xff]
    %v1316 = vld [vmem:[#allocation8 + $0x248] sm:$0xff]
    %v1317 = vld [vmem:[#allocation8 + $0x250] sm:$0xff]
    %v1318 = vld [vmem:[#allocation8 + $0x258] sm:$0xff]
    %v1319 = vld [vmem:[#allocation8 + $0x260] sm:$0xff]
    %v1320 = vld [vmem:[#allocation8 + $0x268] sm:$0xff]
    %v1321 = vld [vmem:[#allocation8 + $0x270] sm:$0xff]
    %v1322 = vld [vmem:[#allocation8 + $0x278] sm:$0xff]
    %v1323 = vld [vmem:[#allocation8 + $0x280] sm:$0xff]
    %v1324 = vld [vmem:[#allocation8 + $0x288] sm:$0xff]
    %v1325 = vld [vmem:[#allocation8 + $0x290] sm:$0xff]
    %v1326 = vld [vmem:[#allocation8 + $0x298] sm:$0xff]
    %v1327 = vld [vmem:[#allocation8 + $0x2a0] sm:$0xff]
    %v1328 = vld [vmem:[#allocation8 + $0x2a8] sm:$0xff]
    %v1329 = vld [vmem:[#allocation8 + $0x2b0] sm:$0xff]
    %v1330 = vld [vmem:[#allocation8 + $0x2b8] sm:$0xff]
    %v1331 = vld [vmem:[#allocation8 + $0x2c0] sm:$0xff]
    %v1332 = vld [vmem:[#allocation8 + $0x2c8] sm:$0xff]
    %v1333 = vld [vmem:[#allocation8 + $0x2d0] sm:$0xff]
    %v1334 = vld [vmem:[#allocation8 + $0x2d8] sm:$0xff]
    %v1335 = vld [vmem:[#allocation8 + $0x2e0] sm:$0xff]
    %v1336 = vld [vmem:[#allocation8 + $0x2e8] sm:$0xff]
    %v1337 = vld [vmem:[#allocation8 + $0x2f0] sm:$0xff]
    %v1338 = vld [vmem:[#allocation8 + $0x2f8] sm:$0xff]
    %v1339 = vld [vmem:[#allocation8 + $0x300] sm:$0xff]
    %v1340 = vld [vmem:[#allocation8 + $0x308] sm:$0xff]
    %v1341 = vld [vmem:[#allocation8 + $0x310] sm:$0xff]
    %v1342 = vld [vmem:[#allocation8 + $0x318] sm:$0xff]
    %v1343 = vld [vmem:[#allocation8 + $0x320] sm:$0xff]
    %v1344 = vld [vmem:[#allocation8 + $0x328] sm:$0xff]
    %v1345 = vld [vmem:[#allocation8 + $0x330] sm:$0xff]
    %v1346 = vld [vmem:[#allocation8 + $0x338] sm:$0xff]
    %v1347 = vld [vmem:[#allocation8 + $0x340] sm:$0xff]
    %v1348 = vld [vmem:[#allocation8 + $0x348] sm:$0xff]
    %v1349 = vld [vmem:[#allocation8 + $0x350] sm:$0xff]
    %v1350 = vld [vmem:[#allocation8 + $0x358] sm:$0xff]
    %v1351 = vld [vmem:[#allocation8 + $0x360] sm:$0xff]
    %v1352 = vld [vmem:[#allocation8 + $0x368] sm:$0xff]
    %v1353 = vld [vmem:[#allocation8 + $0x370] sm:$0xff]
    %v1354 = vld [vmem:[#allocation8 + $0x378] sm:$0xff]
    %v1355 = vld [vmem:[#allocation8 + $0x380] sm:$0xff]
    %v1356 = vld [vmem:[#allocation8 + $0x388] sm:$0xff]
    %v1357 = vld [vmem:[#allocation8 + $0x390] sm:$0xff]
    %v1358 = vld [vmem:[#allocation8 + $0x398] sm:$0xff]
    %v1359 = vld [vmem:[#allocation8 + $0x3a0] sm:$0xff]
    %v1360 = vld [vmem:[#allocation8 + $0x3a8] sm:$0xff]
    %v1361 = vld [vmem:[#allocation8 + $0x3b0] sm:$0xff]
    %v1362 = vld [vmem:[#allocation8 + $0x3b8] sm:$0xff]
    %v1363 = vld [vmem:[#allocation8 + $0x3c0] sm:$0xff]
    %v1364 = vld [vmem:[#allocation8 + $0x3c8] sm:$0xff]
    %v1365 = vld [vmem:[#allocation8 + $0x3d0] sm:$0xff]
    %v1366 = vld [vmem:[#allocation8 + $0x3d8] sm:$0xff]
    %v1367 = vld [vmem:[#allocation8 + $0x3e0] sm:$0xff]
    %v1368 = vld [vmem:[#allocation8 + $0x3e8] sm:$0xff]
    %v1369 = vld [vmem:[#allocation8 + $0x3f0] sm:$0xff]
    %v1370 = vld [vmem:[#allocation8 + $0x3f8] sm:$0xff]
    %s1371 = scalar_lea.vmem %s5, 2
    %v1372 = vld [vmem:[%s1371] ss:$4 sm:$0xf]
    %v1374 = vlaneseq
    %v1375 = vshrl.u32 %v1374, 7
    %v1376 = vsub.s32 0, %v1375
    %v1377 = vrot.slane %v1372, %v1376
    %v1378 = vlaneseq
    %v1379 = vshrl.u32 %v1378, 7
    %v1380 = vsub.s32 1, %v1379
    %v1381 = vrot.slane %v1372, %v1380
    %v1382 = vlaneseq
    %v1383 = vshrl.u32 %v1382, 7
    %v1384 = vsub.s32 2, %v1383
    %v1385 = vrot.slane %v1372, %v1384
    %v1386 = vlaneseq
    %v1387 = vshrl.u32 %v1386, 7
    %v1388 = vsub.s32 3, %v1387
    %v1389 = vrot.slane %v1372, %v1388
    %v1522 = vunpack.c.l.b16 %v1243
    %v1523 = vunpack.c.h.b16 %v1243
    %v1524 = vunpack.c.l.b16 %v1244
    %v1525 = vunpack.c.h.b16 %v1244
    %v1526 = vunpack.c.l.b16 %v1245
    %v1527 = vunpack.c.h.b16 %v1245
    %v1528 = vunpack.c.l.b16 %v1246
    %v1529 = vunpack.c.h.b16 %v1246
    %v1530 = vunpack.c.l.b16 %v1247
    %v1531 = vunpack.c.h.b16 %v1247
    %v1532 = vunpack.c.l.b16 %v1248
    %v1533 = vunpack.c.h.b16 %v1248
    %v1534 = vunpack.c.l.b16 %v1249
    %v1535 = vunpack.c.h.b16 %v1249
    %v1536 = vunpack.c.l.b16 %v1250
    %v1537 = vunpack.c.h.b16 %v1250
    %v1538 = vunpack.c.l.b16 %v1251
    %v1539 = vunpack.c.h.b16 %v1251
    %v1540 = vunpack.c.l.b16 %v1252
    %v1541 = vunpack.c.h.b16 %v1252
    %v1542 = vunpack.c.l.b16 %v1253
    %v1543 = vunpack.c.h.b16 %v1253
    %v1544 = vunpack.c.l.b16 %v1254
    %v1545 = vunpack.c.h.b16 %v1254
    %v1546 = vunpack.c.l.b16 %v1255
    %v1547 = vunpack.c.h.b16 %v1255
    %v1548 = vunpack.c.l.b16 %v1256
    %v1549 = vunpack.c.h.b16 %v1256
    %v1550 = vunpack.c.l.b16 %v1257
    %v1551 = vunpack.c.h.b16 %v1257
    %v1552 = vunpack.c.l.b16 %v1258
    %v1553 = vunpack.c.h.b16 %v1258
    %v1554 = vunpack.c.l.b16 %v1259
    %v1555 = vunpack.c.h.b16 %v1259
    %v1556 = vunpack.c.l.b16 %v1260
    %v1557 = vunpack.c.h.b16 %v1260
    %v1558 = vunpack.c.l.b16 %v1261
    %v1559 = vunpack.c.h.b16 %v1261
    %v1560 = vunpack.c.l.b16 %v1262
    %v1561 = vunpack.c.h.b16 %v1262
    %v1562 = vunpack.c.l.b16 %v1263
    %v1563 = vunpack.c.h.b16 %v1263
    %v1564 = vunpack.c.l.b16 %v1264
    %v1565 = vunpack.c.h.b16 %v1264
    %v1566 = vunpack.c.l.b16 %v1265
    %v1567 = vunpack.c.h.b16 %v1265
    %v1568 = vunpack.c.l.b16 %v1266
    %v1569 = vunpack.c.h.b16 %v1266
    %v1570 = vunpack.c.l.b16 %v1267
    %v1571 = vunpack.c.h.b16 %v1267
    %v1572 = vunpack.c.l.b16 %v1268
    %v1573 = vunpack.c.h.b16 %v1268
    %v1574 = vunpack.c.l.b16 %v1269
    %v1575 = vunpack.c.h.b16 %v1269
    %v1576 = vunpack.c.l.b16 %v1270
    %v1577 = vunpack.c.h.b16 %v1270
    %v1578 = vunpack.c.l.b16 %v1271
    %v1579 = vunpack.c.h.b16 %v1271
    %v1580 = vunpack.c.l.b16 %v1272
    %v1581 = vunpack.c.h.b16 %v1272
    %v1582 = vunpack.c.l.b16 %v1273
    %v1583 = vunpack.c.h.b16 %v1273
    %v1584 = vunpack.c.l.b16 %v1274
    %v1585 = vunpack.c.h.b16 %v1274
    %v1586 = vunpack.c.l.b16 %v1275
    %v1587 = vunpack.c.h.b16 %v1275
    %v1588 = vunpack.c.l.b16 %v1276
    %v1589 = vunpack.c.h.b16 %v1276
    %v1590 = vunpack.c.l.b16 %v1277
    %v1591 = vunpack.c.h.b16 %v1277
    %v1592 = vunpack.c.l.b16 %v1278
    %v1593 = vunpack.c.h.b16 %v1278
    %v1594 = vunpack.c.l.b16 %v1279
    %v1595 = vunpack.c.h.b16 %v1279
    %v1596 = vunpack.c.l.b16 %v1280
    %v1597 = vunpack.c.h.b16 %v1280
    %v1598 = vunpack.c.l.b16 %v1281
    %v1599 = vunpack.c.h.b16 %v1281
    %v1600 = vunpack.c.l.b16 %v1282
    %v1601 = vunpack.c.h.b16 %v1282
    %v1602 = vunpack.c.l.b16 %v1283
    %v1603 = vunpack.c.h.b16 %v1283
    %v1604 = vunpack.c.l.b16 %v1284
    %v1605 = vunpack.c.h.b16 %v1284
    %v1606 = vunpack.c.l.b16 %v1285
    %v1607 = vunpack.c.h.b16 %v1285
    %v1608 = vunpack.c.l.b16 %v1286
    %v1609 = vunpack.c.h.b16 %v1286
    %v1610 = vunpack.c.l.b16 %v1287
    %v1611 = vunpack.c.h.b16 %v1287
    %v1612 = vunpack.c.l.b16 %v1288
    %v1613 = vunpack.c.h.b16 %v1288
    %v1614 = vunpack.c.l.b16 %v1289
    %v1615 = vunpack.c.h.b16 %v1289
    %v1616 = vunpack.c.l.b16 %v1290
    %v1617 = vunpack.c.h.b16 %v1290
    %v1618 = vunpack.c.l.b16 %v1291
    %v1619 = vunpack.c.h.b16 %v1291
    %v1620 = vunpack.c.l.b16 %v1292
    %v1621 = vunpack.c.h.b16 %v1292
    %v1622 = vunpack.c.l.b16 %v1293
    %v1623 = vunpack.c.h.b16 %v1293
    %v1624 = vunpack.c.l.b16 %v1294
    %v1625 = vunpack.c.h.b16 %v1294
    %v1626 = vunpack.c.l.b16 %v1295
    %v1627 = vunpack.c.h.b16 %v1295
    %v1628 = vunpack.c.l.b16 %v1296
    %v1629 = vunpack.c.h.b16 %v1296
    %v1630 = vunpack.c.l.b16 %v1297
    %v1631 = vunpack.c.h.b16 %v1297
    %v1632 = vunpack.c.l.b16 %v1298
    %v1633 = vunpack.c.h.b16 %v1298
    %v1634 = vunpack.c.l.b16 %v1299
    %v1635 = vunpack.c.h.b16 %v1299
    %v1636 = vunpack.c.l.b16 %v1300
    %v1637 = vunpack.c.h.b16 %v1300
    %v1638 = vunpack.c.l.b16 %v1301
    %v1639 = vunpack.c.h.b16 %v1301
    %v1640 = vunpack.c.l.b16 %v1302
    %v1641 = vunpack.c.h.b16 %v1302
    %v1642 = vunpack.c.l.b16 %v1303
    %v1643 = vunpack.c.h.b16 %v1303
    %v1644 = vunpack.c.l.b16 %v1304
    %v1645 = vunpack.c.h.b16 %v1304
    %v1646 = vunpack.c.l.b16 %v1305
    %v1647 = vunpack.c.h.b16 %v1305
    %v1648 = vunpack.c.l.b16 %v1306
    %v1649 = vunpack.c.h.b16 %v1306
    %v1650 = vunpack.c.l.b16 %v1307
    %v1651 = vunpack.c.h.b16 %v1307
    %v1652 = vunpack.c.l.b16 %v1308
    %v1653 = vunpack.c.h.b16 %v1308
    %v1654 = vunpack.c.l.b16 %v1309
    %v1655 = vunpack.c.h.b16 %v1309
    %v1656 = vunpack.c.l.b16 %v1310
    %v1657 = vunpack.c.h.b16 %v1310
    %v1658 = vunpack.c.l.b16 %v1311
    %v1659 = vunpack.c.h.b16 %v1311
    %v1660 = vunpack.c.l.b16 %v1312
    %v1661 = vunpack.c.h.b16 %v1312
    %v1662 = vunpack.c.l.b16 %v1313
    %v1663 = vunpack.c.h.b16 %v1313
    %v1664 = vunpack.c.l.b16 %v1314
    %v1665 = vunpack.c.h.b16 %v1314
    %v1666 = vunpack.c.l.b16 %v1315
    %v1667 = vunpack.c.h.b16 %v1315
    %v1668 = vunpack.c.l.b16 %v1316
    %v1669 = vunpack.c.h.b16 %v1316
    %v1670 = vunpack.c.l.b16 %v1317
    %v1671 = vunpack.c.h.b16 %v1317
    %v1672 = vunpack.c.l.b16 %v1318
    %v1673 = vunpack.c.h.b16 %v1318
    %v1674 = vunpack.c.l.b16 %v1319
    %v1675 = vunpack.c.h.b16 %v1319
    %v1676 = vunpack.c.l.b16 %v1320
    %v1677 = vunpack.c.h.b16 %v1320
    %v1678 = vunpack.c.l.b16 %v1321
    %v1679 = vunpack.c.h.b16 %v1321
    %v1680 = vunpack.c.l.b16 %v1322
    %v1681 = vunpack.c.h.b16 %v1322
    %v1682 = vunpack.c.l.b16 %v1323
    %v1683 = vunpack.c.h.b16 %v1323
    %v1684 = vunpack.c.l.b16 %v1324
    %v1685 = vunpack.c.h.b16 %v1324
    %v1686 = vunpack.c.l.b16 %v1325
    %v1687 = vunpack.c.h.b16 %v1325
    %v1688 = vunpack.c.l.b16 %v1326
    %v1689 = vunpack.c.h.b16 %v1326
    %v1690 = vunpack.c.l.b16 %v1327
    %v1691 = vunpack.c.h.b16 %v1327
    %v1692 = vunpack.c.l.b16 %v1328
    %v1693 = vunpack.c.h.b16 %v1328
    %v1694 = vunpack.c.l.b16 %v1329
    %v1695 = vunpack.c.h.b16 %v1329
    %v1696 = vunpack.c.l.b16 %v1330
    %v1697 = vunpack.c.h.b16 %v1330
    %v1698 = vunpack.c.l.b16 %v1331
    %v1699 = vunpack.c.h.b16 %v1331
    %v1700 = vunpack.c.l.b16 %v1332
    %v1701 = vunpack.c.h.b16 %v1332
    %v1702 = vunpack.c.l.b16 %v1333
    %v1703 = vunpack.c.h.b16 %v1333
    %v1704 = vunpack.c.l.b16 %v1334
    %v1705 = vunpack.c.h.b16 %v1334
    %v1706 = vunpack.c.l.b16 %v1335
    %v1707 = vunpack.c.h.b16 %v1335
    %v1708 = vunpack.c.l.b16 %v1336
    %v1709 = vunpack.c.h.b16 %v1336
    %v1710 = vunpack.c.l.b16 %v1337
    %v1711 = vunpack.c.h.b16 %v1337
    %v1712 = vunpack.c.l.b16 %v1338
    %v1713 = vunpack.c.h.b16 %v1338
    %v1714 = vunpack.c.l.b16 %v1339
    %v1715 = vunpack.c.h.b16 %v1339
    %v1716 = vunpack.c.l.b16 %v1340
    %v1717 = vunpack.c.h.b16 %v1340
    %v1718 = vunpack.c.l.b16 %v1341
    %v1719 = vunpack.c.h.b16 %v1341
    %v1720 = vunpack.c.l.b16 %v1342
    %v1721 = vunpack.c.h.b16 %v1342
    %v1722 = vunpack.c.l.b16 %v1343
    %v1723 = vunpack.c.h.b16 %v1343
    %v1724 = vunpack.c.l.b16 %v1344
    %v1725 = vunpack.c.h.b16 %v1344
    %v1726 = vunpack.c.l.b16 %v1345
    %v1727 = vunpack.c.h.b16 %v1345
    %v1728 = vunpack.c.l.b16 %v1346
    %v1729 = vunpack.c.h.b16 %v1346
    %v1730 = vunpack.c.l.b16 %v1347
    %v1731 = vunpack.c.h.b16 %v1347
    %v1732 = vunpack.c.l.b16 %v1348
    %v1733 = vunpack.c.h.b16 %v1348
    %v1734 = vunpack.c.l.b16 %v1349
    %v1735 = vunpack.c.h.b16 %v1349
    %v1736 = vunpack.c.l.b16 %v1350
    %v1737 = vunpack.c.h.b16 %v1350
    %v1738 = vunpack.c.l.b16 %v1351
    %v1739 = vunpack.c.h.b16 %v1351
    %v1740 = vunpack.c.l.b16 %v1352
    %v1741 = vunpack.c.h.b16 %v1352
    %v1742 = vunpack.c.l.b16 %v1353
    %v1743 = vunpack.c.h.b16 %v1353
    %v1744 = vunpack.c.l.b16 %v1354
    %v1745 = vunpack.c.h.b16 %v1354
    %v1746 = vunpack.c.l.b16 %v1355
    %v1747 = vunpack.c.h.b16 %v1355
    %v1748 = vunpack.c.l.b16 %v1356
    %v1749 = vunpack.c.h.b16 %v1356
    %v1750 = vunpack.c.l.b16 %v1357
    %v1751 = vunpack.c.h.b16 %v1357
    %v1752 = vunpack.c.l.b16 %v1358
    %v1753 = vunpack.c.h.b16 %v1358
    %v1754 = vunpack.c.l.b16 %v1359
    %v1755 = vunpack.c.h.b16 %v1359
    %v1756 = vunpack.c.l.b16 %v1360
    %v1757 = vunpack.c.h.b16 %v1360
    %v1758 = vunpack.c.l.b16 %v1361
    %v1759 = vunpack.c.h.b16 %v1361
    %v1760 = vunpack.c.l.b16 %v1362
    %v1761 = vunpack.c.h.b16 %v1362
    %v1762 = vunpack.c.l.b16 %v1363
    %v1763 = vunpack.c.h.b16 %v1363
    %v1764 = vunpack.c.l.b16 %v1364
    %v1765 = vunpack.c.h.b16 %v1364
    %v1766 = vunpack.c.l.b16 %v1365
    %v1767 = vunpack.c.h.b16 %v1365
    %v1768 = vunpack.c.l.b16 %v1366
    %v1769 = vunpack.c.h.b16 %v1366
    %v1770 = vunpack.c.l.b16 %v1367
    %v1771 = vunpack.c.h.b16 %v1367
    %v1772 = vunpack.c.l.b16 %v1368
    %v1773 = vunpack.c.h.b16 %v1368
    %v1774 = vunpack.c.l.b16 %v1369
    %v1775 = vunpack.c.h.b16 %v1369
    %v1776 = vunpack.c.l.b16 %v1370
    %v1777 = vunpack.c.h.b16 %v1370
    %v1778 = vpack.c.b16 %v1526, %v1522
    %v1779 = vpack.c.b16 %v1527, %v1523
    %v1780 = vpack.c.b16 %v1528, %v1524
    %v1781 = vpack.c.b16 %v1529, %v1525
    %v1782 = vpack.c.b16 %v1534, %v1530
    %v1783 = vpack.c.b16 %v1535, %v1531
    %v1784 = vpack.c.b16 %v1536, %v1532
    %v1785 = vpack.c.b16 %v1537, %v1533
    %v1786 = vpack.c.b16 %v1542, %v1538
    %v1787 = vpack.c.b16 %v1543, %v1539
    %v1788 = vpack.c.b16 %v1544, %v1540
    %v1789 = vpack.c.b16 %v1545, %v1541
    %v1790 = vpack.c.b16 %v1550, %v1546
    %v1791 = vpack.c.b16 %v1551, %v1547
    %v1792 = vpack.c.b16 %v1552, %v1548
    %v1793 = vpack.c.b16 %v1553, %v1549
    %v1794 = vpack.c.b16 %v1558, %v1554
    %v1795 = vpack.c.b16 %v1559, %v1555
    %v1796 = vpack.c.b16 %v1560, %v1556
    %v1797 = vpack.c.b16 %v1561, %v1557
    %v1798 = vpack.c.b16 %v1566, %v1562
    %v1799 = vpack.c.b16 %v1567, %v1563
    %v1800 = vpack.c.b16 %v1568, %v1564
    %v1801 = vpack.c.b16 %v1569, %v1565
    %v1802 = vpack.c.b16 %v1574, %v1570
    %v1803 = vpack.c.b16 %v1575, %v1571
    %v1804 = vpack.c.b16 %v1576, %v1572
    %v1805 = vpack.c.b16 %v1577, %v1573
    %v1806 = vpack.c.b16 %v1582, %v1578
    %v1807 = vpack.c.b16 %v1583, %v1579
    %v1808 = vpack.c.b16 %v1584, %v1580
    %v1809 = vpack.c.b16 %v1585, %v1581
    %v1810 = vpack.c.b16 %v1590, %v1586
    %v1811 = vpack.c.b16 %v1591, %v1587
    %v1812 = vpack.c.b16 %v1592, %v1588
    %v1813 = vpack.c.b16 %v1593, %v1589
    %v1814 = vpack.c.b16 %v1598, %v1594
    %v1815 = vpack.c.b16 %v1599, %v1595
    %v1816 = vpack.c.b16 %v1600, %v1596
    %v1817 = vpack.c.b16 %v1601, %v1597
    %v1818 = vpack.c.b16 %v1606, %v1602
    %v1819 = vpack.c.b16 %v1607, %v1603
    %v1820 = vpack.c.b16 %v1608, %v1604
    %v1821 = vpack.c.b16 %v1609, %v1605
    %v1822 = vpack.c.b16 %v1614, %v1610
    %v1823 = vpack.c.b16 %v1615, %v1611
    %v1824 = vpack.c.b16 %v1616, %v1612
    %v1825 = vpack.c.b16 %v1617, %v1613
    %v1826 = vpack.c.b16 %v1622, %v1618
    %v1827 = vpack.c.b16 %v1623, %v1619
    %v1828 = vpack.c.b16 %v1624, %v1620
    %v1829 = vpack.c.b16 %v1625, %v1621
    %v1830 = vpack.c.b16 %v1630, %v1626
    %v1831 = vpack.c.b16 %v1631, %v1627
    %v1832 = vpack.c.b16 %v1632, %v1628
    %v1833 = vpack.c.b16 %v1633, %v1629
    %v1834 = vpack.c.b16 %v1638, %v1634
    %v1835 = vpack.c.b16 %v1639, %v1635
    %v1836 = vpack.c.b16 %v1640, %v1636
    %v1837 = vpack.c.b16 %v1641, %v1637
    %v1838 = vpack.c.b16 %v1646, %v1642
    %v1839 = vpack.c.b16 %v1647, %v1643
    %v1840 = vpack.c.b16 %v1648, %v1644
    %v1841 = vpack.c.b16 %v1649, %v1645
    %v1842 = vpack.c.b16 %v1654, %v1650
    %v1843 = vpack.c.b16 %v1655, %v1651
    %v1844 = vpack.c.b16 %v1656, %v1652
    %v1845 = vpack.c.b16 %v1657, %v1653
    %v1846 = vpack.c.b16 %v1662, %v1658
    %v1847 = vpack.c.b16 %v1663, %v1659
    %v1848 = vpack.c.b16 %v1664, %v1660
    %v1849 = vpack.c.b16 %v1665, %v1661
    %v1850 = vpack.c.b16 %v1670, %v1666
    %v1851 = vpack.c.b16 %v1671, %v1667
    %v1852 = vpack.c.b16 %v1672, %v1668
    %v1853 = vpack.c.b16 %v1673, %v1669
    %v1854 = vpack.c.b16 %v1678, %v1674
    %v1855 = vpack.c.b16 %v1679, %v1675
    %v1856 = vpack.c.b16 %v1680, %v1676
    %v1857 = vpack.c.b16 %v1681, %v1677
    %v1858 = vpack.c.b16 %v1686, %v1682
    %v1859 = vpack.c.b16 %v1687, %v1683
    %v1860 = vpack.c.b16 %v1688, %v1684
    %v1861 = vpack.c.b16 %v1689, %v1685
    %v1862 = vpack.c.b16 %v1694, %v1690
    %v1863 = vpack.c.b16 %v1695, %v1691
    %v1864 = vpack.c.b16 %v1696, %v1692
    %v1865 = vpack.c.b16 %v1697, %v1693
    %v1866 = vpack.c.b16 %v1702, %v1698
    %v1867 = vpack.c.b16 %v1703, %v1699
    %v1868 = vpack.c.b16 %v1704, %v1700
    %v1869 = vpack.c.b16 %v1705, %v1701
    %v1870 = vpack.c.b16 %v1710, %v1706
    %v1871 = vpack.c.b16 %v1711, %v1707
    %v1872 = vpack.c.b16 %v1712, %v1708
    %v1873 = vpack.c.b16 %v1713, %v1709
    %v1874 = vpack.c.b16 %v1718, %v1714
    %v1875 = vpack.c.b16 %v1719, %v1715
    %v1876 = vpack.c.b16 %v1720, %v1716
    %v1877 = vpack.c.b16 %v1721, %v1717
    %v1878 = vpack.c.b16 %v1726, %v1722
    %v1879 = vpack.c.b16 %v1727, %v1723
    %v1880 = vpack.c.b16 %v1728, %v1724
    %v1881 = vpack.c.b16 %v1729, %v1725
    %v1882 = vpack.c.b16 %v1734, %v1730
    %v1883 = vpack.c.b16 %v1735, %v1731
    %v1884 = vpack.c.b16 %v1736, %v1732
    %v1885 = vpack.c.b16 %v1737, %v1733
    %v1886 = vpack.c.b16 %v1742, %v1738
    %v1887 = vpack.c.b16 %v1743, %v1739
    %v1888 = vpack.c.b16 %v1744, %v1740
    %v1889 = vpack.c.b16 %v1745, %v1741
    %v1890 = vpack.c.b16 %v1750, %v1746
    %v1891 = vpack.c.b16 %v1751, %v1747
    %v1892 = vpack.c.b16 %v1752, %v1748
    %v1893 = vpack.c.b16 %v1753, %v1749
    %v1894 = vpack.c.b16 %v1758, %v1754
    %v1895 = vpack.c.b16 %v1759, %v1755
    %v1896 = vpack.c.b16 %v1760, %v1756
    %v1897 = vpack.c.b16 %v1761, %v1757
    %v1898 = vpack.c.b16 %v1766, %v1762
    %v1899 = vpack.c.b16 %v1767, %v1763
    %v1900 = vpack.c.b16 %v1768, %v1764
    %v1901 = vpack.c.b16 %v1769, %v1765
    %v1902 = vpack.c.b16 %v1774, %v1770
    %v1903 = vpack.c.b16 %v1775, %v1771
    %v1904 = vpack.c.b16 %v1776, %v1772
    %v1905 = vpack.c.b16 %v1777, %v1773
    %2034 = vmatprep.subr.bf16.mxu0 %v1779
    %2035 = vmatpush1.bf16.msra.mxu0 %v1778
    %2036 = vmatprep.subr.bf16.mxu0 %v1783
    %2037 = vmatpush1.bf16.msra.mxu0 %v1782
    %2038 = vmatprep.subr.bf16.mxu0 %v1787
    %2039 = vmatpush1.bf16.msra.mxu0 %v1786
    %2040 = vmatprep.subr.bf16.mxu0 %v1791
    %2041 = vmatpush1.bf16.msra.mxu0 %v1790
    %2042 = vmatprep.subr.bf16.mxu0 %v1795
    %2043 = vmatpush1.bf16.msra.mxu0 %v1794
    %2044 = vmatprep.subr.bf16.mxu0 %v1799
    %2045 = vmatpush1.bf16.msra.mxu0 %v1798
    %2046 = vmatprep.subr.bf16.mxu0 %v1803
    %2047 = vmatpush1.bf16.msra.mxu0 %v1802
    %2048 = vmatprep.subr.bf16.mxu0 %v1807
    %2049 = vmatpush1.bf16.msra.mxu0 %v1806
    %2050 = vmatprep.subr.bf16.mxu0 %v1811
    %2051 = vmatpush1.bf16.msra.mxu0 %v1810
    %2052 = vmatprep.subr.bf16.mxu0 %v1815
    %2053 = vmatpush1.bf16.msra.mxu0 %v1814
    %2054 = vmatprep.subr.bf16.mxu0 %v1819
    %2055 = vmatpush1.bf16.msra.mxu0 %v1818
    %2056 = vmatprep.subr.bf16.mxu0 %v1823
    %2057 = vmatpush1.bf16.msra.mxu0 %v1822
    %2058 = vmatprep.subr.bf16.mxu0 %v1827
    %2059 = vmatpush1.bf16.msra.mxu0 %v1826
    %2060 = vmatprep.subr.bf16.mxu0 %v1831
    %2061 = vmatpush1.bf16.msra.mxu0 %v1830
    %2062 = vmatprep.subr.bf16.mxu0 %v1835
    %2063 = vmatpush1.bf16.msra.mxu0 %v1834
    %2064 = vmatprep.subr.bf16.mxu0 %v1839
    %2065 = vmatpush1.bf16.msra.mxu0 %v1838
    %2066 = vmatprep.mubr.bf16.mxu0 %v1240
    %2067 = vmatmul.mubr.bf16.gmra.mrb[0].mxu0 %v1239
    %v2068 = vpop.f32.mrb[0].mxu0
    %v2069 = vadd.f32 %v1377, %v2068
    %v2070 = vpop.f32.mrb[0].mxu0
    %v2071 = vadd.f32 %v1381, %v2070
    %v2072 = vpop.f32.mrb[0].mxu0
    %v2073 = vadd.f32 %v1377, %v2072
    %v2074 = vpop.f32.mrb[0].mxu0
    %v2075 = vadd.f32 %v1381, %v2074
    %2076 = vdwg.mxu0
    %2077 = vmatprep.subr.bf16.mxu0 %v1843
    %2078 = vmatpush1.bf16.msra.mxu0 %v1842
    %2079 = vmatprep.subr.bf16.mxu0 %v1847
    %2080 = vmatpush1.bf16.msra.mxu0 %v1846
    %2081 = vmatprep.subr.bf16.mxu0 %v1851
    %2082 = vmatpush1.bf16.msra.mxu0 %v1850
    %2083 = vmatprep.subr.bf16.mxu0 %v1855
    %2084 = vmatpush1.bf16.msra.mxu0 %v1854
    %2085 = vmatprep.subr.bf16.mxu0 %v1859
    %2086 = vmatpush1.bf16.msra.mxu0 %v1858
    %2087 = vmatprep.subr.bf16.mxu0 %v1863
    %2088 = vmatpush1.bf16.msra.mxu0 %v1862
    %2089 = vmatprep.subr.bf16.mxu0 %v1867
    %2090 = vmatpush1.bf16.msra.mxu0 %v1866
    %2091 = vmatprep.subr.bf16.mxu0 %v1871
    %2092 = vmatpush1.bf16.msra.mxu0 %v1870
    %2093 = vmatprep.subr.bf16.mxu0 %v1875
    %2094 = vmatpush1.bf16.msra.mxu0 %v1874
    %2095 = vmatprep.subr.bf16.mxu0 %v1879
    %2096 = vmatpush1.bf16.msra.mxu0 %v1878
    %2097 = vmatprep.subr.bf16.mxu0 %v1883
    %2098 = vmatpush1.bf16.msra.mxu0 %v1882
    %2099 = vmatprep.subr.bf16.mxu0 %v1887
    %2100 = vmatpush1.bf16.msra.mxu0 %v1886
    %2101 = vmatprep.subr.bf16.mxu0 %v1891
    %2102 = vmatpush1.bf16.msra.mxu0 %v1890
    %2103 = vmatprep.subr.bf16.mxu0 %v1895
    %2104 = vmatpush1.bf16.msra.mxu0 %v1894
    %2105 = vmatprep.subr.bf16.mxu0 %v1899
    %2106 = vmatpush1.bf16.msra.mxu0 %v1898
    %2107 = vmatprep.subr.bf16.mxu0 %v1903
    %2108 = vmatpush1.bf16.msra.mxu0 %v1902
    %2109 = vmatprep.mubr.bf16.mxu0 %v1242
    %2110 = vmatmul.mubr.bf16.gmra.mrb[0].mxu0 %v1241
    %v2111 = vpop.f32.mrb[0].mxu0
    %v2112 = vadd.f32 %v2069, %v2111
    %v2113 = vpop.f32.mrb[0].mxu0
    %v2114 = vadd.f32 %v2071, %v2113
    %v2115 = vpop.f32.mrb[0].mxu0
    %v2116 = vadd.f32 %v2073, %v2115
    %v2117 = vpop.f32.mrb[0].mxu0
    %v2118 = vadd.f32 %v2075, %v2117
    %2119 = vdwg.mxu0
    %2120 = vmatprep.subr.bf16.mxu0 %v1781
    %2121 = vmatpush1.bf16.msra.mxu0 %v1780
    %2122 = vmatprep.subr.bf16.mxu0 %v1785
    %2123 = vmatpush1.bf16.msra.mxu0 %v1784
    %2124 = vmatprep.subr.bf16.mxu0 %v1789
    %2125 = vmatpush1.bf16.msra.mxu0 %v1788
    %2126 = vmatprep.subr.bf16.mxu0 %v1793
    %2127 = vmatpush1.bf16.msra.mxu0 %v1792
    %2128 = vmatprep.subr.bf16.mxu0 %v1797
    %2129 = vmatpush1.bf16.msra.mxu0 %v1796
    %2130 = vmatprep.subr.bf16.mxu0 %v1801
    %2131 = vmatpush1.bf16.msra.mxu0 %v1800
    %2132 = vmatprep.subr.bf16.mxu0 %v1805
    %2133 = vmatpush1.bf16.msra.mxu0 %v1804
    %2134 = vmatprep.subr.bf16.mxu0 %v1809
    %2135 = vmatpush1.bf16.msra.mxu0 %v1808
    %2136 = vmatprep.subr.bf16.mxu0 %v1813
    %2137 = vmatpush1.bf16.msra.mxu0 %v1812
    %2138 = vmatprep.subr.bf16.mxu0 %v1817
    %2139 = vmatpush1.bf16.msra.mxu0 %v1816
    %2140 = vmatprep.subr.bf16.mxu0 %v1821
    %2141 = vmatpush1.bf16.msra.mxu0 %v1820
    %2142 = vmatprep.subr.bf16.mxu0 %v1825
    %2143 = vmatpush1.bf16.msra.mxu0 %v1824
    %2144 = vmatprep.subr.bf16.mxu0 %v1829
    %2145 = vmatpush1.bf16.msra.mxu0 %v1828
    %2146 = vmatprep.subr.bf16.mxu0 %v1833
    %2147 = vmatpush1.bf16.msra.mxu0 %v1832
    %2148 = vmatprep.subr.bf16.mxu0 %v1837
    %2149 = vmatpush1.bf16.msra.mxu0 %v1836
    %2150 = vmatprep.subr.bf16.mxu0 %v1841
    %2151 = vmatpush1.bf16.msra.mxu0 %v1840
    %2152 = vmatprep.mubr.bf16.mxu0 %v1240
    %2153 = vmatmul.mubr.bf16.gmra.mrb[0].mxu0 %v1239
    %v2154 = vpop.f32.mrb[0].mxu0
    %v2155 = vadd.f32 %v1385, %v2154
    %v2156 = vpop.f32.mrb[0].mxu0
    %v2157 = vadd.f32 %v1389, %v2156
    %v2158 = vpop.f32.mrb[0].mxu0
    %v2159 = vadd.f32 %v1385, %v2158
    %v2160 = vpop.f32.mrb[0].mxu0
    %v2161 = vadd.f32 %v1389, %v2160
    %2162 = vdwg.mxu0
    %2163 = vmatprep.subr.bf16.mxu0 %v1845
    %2164 = vmatpush1.bf16.msra.mxu0 %v1844
    %2165 = vmatprep.subr.bf16.mxu0 %v1849
    %2166 = vmatpush1.bf16.msra.mxu0 %v1848
    %2167 = vmatprep.subr.bf16.mxu0 %v1853
    %2168 = vmatpush1.bf16.msra.mxu0 %v1852
    %2169 = vmatprep.subr.bf16.mxu0 %v1857
    %2170 = vmatpush1.bf16.msra.mxu0 %v1856
    %2171 = vmatprep.subr.bf16.mxu0 %v1861
    %2172 = vmatpush1.bf16.msra.mxu0 %v1860
    %2173 = vmatprep.subr.bf16.mxu0 %v1865
    %2174 = vmatpush1.bf16.msra.mxu0 %v1864
    %2175 = vmatprep.subr.bf16.mxu0 %v1869
    %2176 = vmatpush1.bf16.msra.mxu0 %v1868
    %2177 = vmatprep.subr.bf16.mxu0 %v1873
    %2178 = vmatpush1.bf16.msra.mxu0 %v1872
    %2179 = vmatprep.subr.bf16.mxu0 %v1877
    %2180 = vmatpush1.bf16.msra.mxu0 %v1876
    %2181 = vmatprep.subr.bf16.mxu0 %v1881
    %2182 = vmatpush1.bf16.msra.mxu0 %v1880
    %2183 = vmatprep.subr.bf16.mxu0 %v1885
    %2184 = vmatpush1.bf16.msra.mxu0 %v1884
    %2185 = vmatprep.subr.bf16.mxu0 %v1889
    %2186 = vmatpush1.bf16.msra.mxu0 %v1888
    %2187 = vmatprep.subr.bf16.mxu0 %v1893
    %2188 = vmatpush1.bf16.msra.mxu0 %v1892
    %2189 = vmatprep.subr.bf16.mxu0 %v1897
    %2190 = vmatpush1.bf16.msra.mxu0 %v1896
    %2191 = vmatprep.subr.bf16.mxu0 %v1901
    %2192 = vmatpush1.bf16.msra.mxu0 %v1900
    %2193 = vmatprep.subr.bf16.mxu0 %v1905
    %2194 = vmatpush1.bf16.msra.mxu0 %v1904
    %2195 = vmatprep.mubr.bf16.mxu0 %v1242
    %2196 = vmatmul.mubr.bf16.gmra.mrb[0].mxu0 %v1241
    %v2197 = vpop.f32.mrb[0].mxu0
    %v2198 = vadd.f32 %v2155, %v2197
    %v2199 = vpop.f32.mrb[0].mxu0
    %v2200 = vadd.f32 %v2157, %v2199
    %v2201 = vpop.f32.mrb[0].mxu0
    %v2202 = vadd.f32 %v2159, %v2201
    %v2203 = vpop.f32.mrb[0].mxu0
    %v2204 = vadd.f32 %v2161, %v2203
    %2205 = vdwg.mxu0
    %v2206 = vmax.f32 %v2112, 0.0
    %v2207 = vmax.f32 %v2114, 0.0
    %v2208 = vmax.f32 %v2198, 0.0
    %v2209 = vmax.f32 %v2200, 0.0
    %v2210 = vmax.f32 %v2116, 0.0
    %v2211 = vmax.f32 %v2118, 0.0
    %v2212 = vmax.f32 %v2202, 0.0
    %v2213 = vmax.f32 %v2204, 0.0
    %v2214 = vpack.c.bf16 %v2210, %v2206
    %v2215 = vpack.c.bf16 %v2211, %v2207
    %v2216 = vpack.c.bf16 %v2212, %v2208
    %v2217 = vpack.c.bf16 %v2213, %v2209
    %v2218 = vld [vmem:[#allocation10] sm:$0xf]
    %v2219 = vld [vmem:[#allocation10 + $0x4] sm:$0xf]
    %v2220 = vld [vmem:[#allocation10 + $0x8] sm:$0xf]
    %v2221 = vld [vmem:[#allocation10 + $0xc] sm:$0xf]
    %v2222 = vld [vmem:[#allocation10 + $0x10] sm:$0xf]
    %v2223 = vld [vmem:[#allocation10 + $0x14] sm:$0xf]
    %v2224 = vld [vmem:[#allocation10 + $0x18] sm:$0xf]
    %v2225 = vld [vmem:[#allocation10 + $0x1c] sm:$0xf]
    %v2226 = vld [vmem:[#allocation10 + $0x20] sm:$0xf]
    %v2227 = vld [vmem:[#allocation10 + $0x24] sm:$0xf]
    %v2228 = vld [vmem:[#allocation10 + $0x28] sm:$0xf]
    %v2229 = vld [vmem:[#allocation10 + $0x2c] sm:$0xf]
    %v2230 = vld [vmem:[#allocation10 + $0x30] sm:$0xf]
    %v2231 = vld [vmem:[#allocation10 + $0x34] sm:$0xf]
    %v2232 = vld [vmem:[#allocation10 + $0x38] sm:$0xf]
    %v2233 = vld [vmem:[#allocation10 + $0x3c] sm:$0xf]
    %v2234 = vld [vmem:[#allocation10 + $0x40] sm:$0xf]
    %v2235 = vld [vmem:[#allocation10 + $0x44] sm:$0xf]
    %v2236 = vld [vmem:[#allocation10 + $0x48] sm:$0xf]
    %v2237 = vld [vmem:[#allocation10 + $0x4c] sm:$0xf]
    %v2238 = vld [vmem:[#allocation10 + $0x50] sm:$0xf]
    %v2239 = vld [vmem:[#allocation10 + $0x54] sm:$0xf]
    %v2240 = vld [vmem:[#allocation10 + $0x58] sm:$0xf]
    %v2241 = vld [vmem:[#allocation10 + $0x5c] sm:$0xf]
    %v2242 = vld [vmem:[#allocation10 + $0x60] sm:$0xf]
    %v2243 = vld [vmem:[#allocation10 + $0x64] sm:$0xf]
    %v2244 = vld [vmem:[#allocation10 + $0x68] sm:$0xf]
    %v2245 = vld [vmem:[#allocation10 + $0x6c] sm:$0xf]
    %v2246 = vld [vmem:[#allocation10 + $0x70] sm:$0xf]
    %v2247 = vld [vmem:[#allocation10 + $0x74] sm:$0xf]
    %v2248 = vld [vmem:[#allocation10 + $0x78] sm:$0xf]
    %v2249 = vld [vmem:[#allocation10 + $0x7c] sm:$0xf]
    %v2250 = vld [vmem:[#allocation10 + $0x80] sm:$0xf]
    %v2251 = vld [vmem:[#allocation10 + $0x84] sm:$0xf]
    %v2252 = vld [vmem:[#allocation10 + $0x88] sm:$0xf]
    %v2253 = vld [vmem:[#allocation10 + $0x8c] sm:$0xf]
    %v2254 = vld [vmem:[#allocation10 + $0x90] sm:$0xf]
    %v2255 = vld [vmem:[#allocation10 + $0x94] sm:$0xf]
    %v2256 = vld [vmem:[#allocation10 + $0x98] sm:$0xf]
    %v2257 = vld [vmem:[#allocation10 + $0x9c] sm:$0xf]
    %v2258 = vld [vmem:[#allocation10 + $0xa0] sm:$0xf]
    %v2259 = vld [vmem:[#allocation10 + $0xa4] sm:$0xf]
    %v2260 = vld [vmem:[#allocation10 + $0xa8] sm:$0xf]
    %v2261 = vld [vmem:[#allocation10 + $0xac] sm:$0xf]
    %v2262 = vld [vmem:[#allocation10 + $0xb0] sm:$0xf]
    %v2263 = vld [vmem:[#allocation10 + $0xb4] sm:$0xf]
    %v2264 = vld [vmem:[#allocation10 + $0xb8] sm:$0xf]
    %v2265 = vld [vmem:[#allocation10 + $0xbc] sm:$0xf]
    %v2266 = vld [vmem:[#allocation10 + $0xc0] sm:$0xf]
    %v2267 = vld [vmem:[#allocation10 + $0xc4] sm:$0xf]
    %v2268 = vld [vmem:[#allocation10 + $0xc8] sm:$0xf]
    %v2269 = vld [vmem:[#allocation10 + $0xcc] sm:$0xf]
    %v2270 = vld [vmem:[#allocation10 + $0xd0] sm:$0xf]
    %v2271 = vld [vmem:[#allocation10 + $0xd4] sm:$0xf]
    %v2272 = vld [vmem:[#allocation10 + $0xd8] sm:$0xf]
    %v2273 = vld [vmem:[#allocation10 + $0xdc] sm:$0xf]
    %v2274 = vld [vmem:[#allocation10 + $0xe0] sm:$0xf]
    %v2275 = vld [vmem:[#allocation10 + $0xe4] sm:$0xf]
    %v2276 = vld [vmem:[#allocation10 + $0xe8] sm:$0xf]
    %v2277 = vld [vmem:[#allocation10 + $0xec] sm:$0xf]
    %v2278 = vld [vmem:[#allocation10 + $0xf0] sm:$0xf]
    %v2279 = vld [vmem:[#allocation10 + $0xf4] sm:$0xf]
    %v2280 = vld [vmem:[#allocation10 + $0xf8] sm:$0xf]
    %v2281 = vld [vmem:[#allocation10 + $0xfc] sm:$0xf]
    %v2282 = vld [vmem:[%s5 + $0x3] sm:$0x1]
    %v2283 = vlaneseq
    %v2284 = vshrl.u32 %v2283, 7
    %v2285 = vsub.s32 0, %v2284
    %v2286 = vrot.slane %v2282, %v2285
    %v2351 = vunpack.c.l.b16 %v2218
    %v2352 = vunpack.c.l.b16 %v2219
    %v2353 = vunpack.c.l.b16 %v2220
    %v2354 = vunpack.c.l.b16 %v2221
    %v2355 = vunpack.c.l.b16 %v2222
    %v2356 = vunpack.c.l.b16 %v2223
    %v2357 = vunpack.c.l.b16 %v2224
    %v2358 = vunpack.c.l.b16 %v2225
    %v2359 = vunpack.c.l.b16 %v2226
    %v2360 = vunpack.c.l.b16 %v2227
    %v2361 = vunpack.c.l.b16 %v2228
    %v2362 = vunpack.c.l.b16 %v2229
    %v2363 = vunpack.c.l.b16 %v2230
    %v2364 = vunpack.c.l.b16 %v2231
    %v2365 = vunpack.c.l.b16 %v2232
    %v2366 = vunpack.c.l.b16 %v2233
    %v2367 = vunpack.c.l.b16 %v2234
    %v2368 = vunpack.c.l.b16 %v2235
    %v2369 = vunpack.c.l.b16 %v2236
    %v2370 = vunpack.c.l.b16 %v2237
    %v2371 = vunpack.c.l.b16 %v2238
    %v2372 = vunpack.c.l.b16 %v2239
    %v2373 = vunpack.c.l.b16 %v2240
    %v2374 = vunpack.c.l.b16 %v2241
    %v2375 = vunpack.c.l.b16 %v2242
    %v2376 = vunpack.c.l.b16 %v2243
    %v2377 = vunpack.c.l.b16 %v2244
    %v2378 = vunpack.c.l.b16 %v2245
    %v2379 = vunpack.c.l.b16 %v2246
    %v2380 = vunpack.c.l.b16 %v2247
    %v2381 = vunpack.c.l.b16 %v2248
    %v2382 = vunpack.c.l.b16 %v2249
    %v2383 = vunpack.c.l.b16 %v2250
    %v2384 = vunpack.c.l.b16 %v2251
    %v2385 = vunpack.c.l.b16 %v2252
    %v2386 = vunpack.c.l.b16 %v2253
    %v2387 = vunpack.c.l.b16 %v2254
    %v2388 = vunpack.c.l.b16 %v2255
    %v2389 = vunpack.c.l.b16 %v2256
    %v2390 = vunpack.c.l.b16 %v2257
    %v2391 = vunpack.c.l.b16 %v2258
    %v2392 = vunpack.c.l.b16 %v2259
    %v2393 = vunpack.c.l.b16 %v2260
    %v2394 = vunpack.c.l.b16 %v2261
    %v2395 = vunpack.c.l.b16 %v2262
    %v2396 = vunpack.c.l.b16 %v2263
    %v2397 = vunpack.c.l.b16 %v2264
    %v2398 = vunpack.c.l.b16 %v2265
    %v2399 = vunpack.c.l.b16 %v2266
    %v2400 = vunpack.c.l.b16 %v2267
    %v2401 = vunpack.c.l.b16 %v2268
    %v2402 = vunpack.c.l.b16 %v2269
    %v2403 = vunpack.c.l.b16 %v2270
    %v2404 = vunpack.c.l.b16 %v2271
    %v2405 = vunpack.c.l.b16 %v2272
    %v2406 = vunpack.c.l.b16 %v2273
    %v2407 = vunpack.c.l.b16 %v2274
    %v2408 = vunpack.c.l.b16 %v2275
    %v2409 = vunpack.c.l.b16 %v2276
    %v2410 = vunpack.c.l.b16 %v2277
    %v2411 = vunpack.c.l.b16 %v2278
    %v2412 = vunpack.c.l.b16 %v2279
    %v2413 = vunpack.c.l.b16 %v2280
    %v2414 = vunpack.c.l.b16 %v2281
    %v2415 = vpack.c.b16 %v2352, %v2351
    %v2416 = vpack.c.b16 %v2354, %v2353
    %v2417 = vpack.c.b16 %v2356, %v2355
    %v2418 = vpack.c.b16 %v2358, %v2357
    %v2419 = vpack.c.b16 %v2360, %v2359
    %v2420 = vpack.c.b16 %v2362, %v2361
    %v2421 = vpack.c.b16 %v2364, %v2363
    %v2422 = vpack.c.b16 %v2366, %v2365
    %v2423 = vpack.c.b16 %v2368, %v2367
    %v2424 = vpack.c.b16 %v2370, %v2369
    %v2425 = vpack.c.b16 %v2372, %v2371
    %v2426 = vpack.c.b16 %v2374, %v2373
    %v2427 = vpack.c.b16 %v2376, %v2375
    %v2428 = vpack.c.b16 %v2378, %v2377
    %v2429 = vpack.c.b16 %v2380, %v2379
    %v2430 = vpack.c.b16 %v2382, %v2381
    %v2431 = vpack.c.b16 %v2384, %v2383
    %v2432 = vpack.c.b16 %v2386, %v2385
    %v2433 = vpack.c.b16 %v2388, %v2387
    %v2434 = vpack.c.b16 %v2390, %v2389
    %v2435 = vpack.c.b16 %v2392, %v2391
    %v2436 = vpack.c.b16 %v2394, %v2393
    %v2437 = vpack.c.b16 %v2396, %v2395
    %v2438 = vpack.c.b16 %v2398, %v2397
    %v2439 = vpack.c.b16 %v2400, %v2399
    %v2440 = vpack.c.b16 %v2402, %v2401
    %v2441 = vpack.c.b16 %v2404, %v2403
    %v2442 = vpack.c.b16 %v2406, %v2405
    %v2443 = vpack.c.b16 %v2408, %v2407
    %v2444 = vpack.c.b16 %v2410, %v2409
    %v2445 = vpack.c.b16 %v2412, %v2411
    %v2446 = vpack.c.b16 %v2414, %v2413
    %2479 = vmatprep.subr.bf16.mxu0 0
    %2480 = vmatpush1.bf16.msra.mxu0 %v2415
    %2481 = vmatprep.subr.bf16.mxu0 0
    %2482 = vmatpush1.bf16.msra.mxu0 %v2416
    %2483 = vmatprep.subr.bf16.mxu0 0
    %2484 = vmatpush1.bf16.msra.mxu0 %v2417
    %2485 = vmatprep.subr.bf16.mxu0 0
    %2486 = vmatpush1.bf16.msra.mxu0 %v2418
    %2487 = vmatprep.subr.bf16.mxu0 0
    %2488 = vmatpush1.bf16.msra.mxu0 %v2419
    %2489 = vmatprep.subr.bf16.mxu0 0
    %2490 = vmatpush1.bf16.msra.mxu0 %v2420
    %2491 = vmatprep.subr.bf16.mxu0 0
    %2492 = vmatpush1.bf16.msra.mxu0 %v2421
    %2493 = vmatprep.subr.bf16.mxu0 0
    %2494 = vmatpush1.bf16.msra.mxu0 %v2422
    %2495 = vmatprep.subr.bf16.mxu0 0
    %2496 = vmatpush1.bf16.msra.mxu0 %v2423
    %2497 = vmatprep.subr.bf16.mxu0 0
    %2498 = vmatpush1.bf16.msra.mxu0 %v2424
    %2499 = vmatprep.subr.bf16.mxu0 0
    %2500 = vmatpush1.bf16.msra.mxu0 %v2425
    %2501 = vmatprep.subr.bf16.mxu0 0
    %2502 = vmatpush1.bf16.msra.mxu0 %v2426
    %2503 = vmatprep.subr.bf16.mxu0 0
    %2504 = vmatpush1.bf16.msra.mxu0 %v2427
    %2505 = vmatprep.subr.bf16.mxu0 0
    %2506 = vmatpush1.bf16.msra.mxu0 %v2428
    %2507 = vmatprep.subr.bf16.mxu0 0
    %2508 = vmatpush1.bf16.msra.mxu0 %v2429
    %2509 = vmatprep.subr.bf16.mxu0 0
    %2510 = vmatpush1.bf16.msra.mxu0 %v2430
    %2511 = vmatprep.mubr.bf16.mxu0 %v2215
    %2512 = vmatmul.mubr.bf16.gmra.mrb[0].mxu0 %v2214
    %v2513 = vpop.f32.mrb[0].mxu0
    %v2514 = vadd.f32 %v2286, %v2513
    %v2515 = vpop.f32.mrb[0].mxu0
    %v2516 = vpop.f32.mrb[0].mxu0
    %v2517 = vadd.f32 %v2286, %v2516
    %v2518 = vpop.f32.mrb[0].mxu0
    %2519 = vdwg.mxu0
    %2520 = vmatprep.subr.bf16.mxu0 0
    %2521 = vmatpush1.bf16.msra.mxu0 %v2431
    %2522 = vmatprep.subr.bf16.mxu0 0
    %2523 = vmatpush1.bf16.msra.mxu0 %v2432
    %2524 = vmatprep.subr.bf16.mxu0 0
    %2525 = vmatpush1.bf16.msra.mxu0 %v2433
    %2526 = vmatprep.subr.bf16.mxu0 0
    %2527 = vmatpush1.bf16.msra.mxu0 %v2434
    %2528 = vmatprep.subr.bf16.mxu0 0
    %2529 = vmatpush1.bf16.msra.mxu0 %v2435
    %2530 = vmatprep.subr.bf16.mxu0 0
    %2531 = vmatpush1.bf16.msra.mxu0 %v2436
    %2532 = vmatprep.subr.bf16.mxu0 0
    %2533 = vmatpush1.bf16.msra.mxu0 %v2437
    %2534 = vmatprep.subr.bf16.mxu0 0
    %2535 = vmatpush1.bf16.msra.mxu0 %v2438
    %2536 = vmatprep.subr.bf16.mxu0 0
    %2537 = vmatpush1.bf16.msra.mxu0 %v2439
    %2538 = vmatprep.subr.bf16.mxu0 0
    %2539 = vmatpush1.bf16.msra.mxu0 %v2440
    %2540 = vmatprep.subr.bf16.mxu0 0
    %2541 = vmatpush1.bf16.msra.mxu0 %v2441
    %2542 = vmatprep.subr.bf16.mxu0 0
    %2543 = vmatpush1.bf16.msra.mxu0 %v2442
    %2544 = vmatprep.subr.bf16.mxu0 0
    %2545 = vmatpush1.bf16.msra.mxu0 %v2443
    %2546 = vmatprep.subr.bf16.mxu0 0
    %2547 = vmatpush1.bf16.msra.mxu0 %v2444
    %2548 = vmatprep.subr.bf16.mxu0 0
    %2549 = vmatpush1.bf16.msra.mxu0 %v2445
    %2550 = vmatprep.subr.bf16.mxu0 0
    %2551 = vmatpush1.bf16.msra.mxu0 %v2446
    %2552 = vmatprep.mubr.bf16.mxu0 %v2217
    %2553 = vmatmul.mubr.bf16.gmra.mrb[0].mxu0 %v2216
    %v2554 = vpop.f32.mrb[0].mxu0
    %v2555 = vadd.f32 %v2514, %v2554
    %v2556 = vpop.f32.mrb[0].mxu0
    %v2557 = vpop.f32.mrb[0].mxu0
    %v2558 = vadd.f32 %v2517, %v2557
    %v2559 = vpop.f32.mrb[0].mxu0
    %2560 = vdwg.mxu0
    %v2561 = vlaneseq
    %v2562 = vand.u32 %v2561, 127
    %vm2563 = vcmp.lt.s32.totalorder %v2562, 16
    %v2564 = vtanh.pop %v2555
    %v2565 = vtanh.pop %v2558
    %v2566 = vsel %vm2563, %v2564, %v2555
    %v2567 = vsel %vm2563, %v2565, %v2558
    %2568 = vst [vmem:[#allocation11] sm:$0xff] %v2566
    %2569 = vst [vmem:[#allocation11 + $0x28] sm:$0xff] %v2567
    %2570 = vst [vmem:[#allocation11 + $0x8] sm:$0xff] %v2206
    %2571 = vst [vmem:[#allocation11 + $0x10] sm:$0xff] %v2207
    %2572 = vst [vmem:[#allocation11 + $0x18] sm:$0xff] %v2208
    %2573 = vst [vmem:[#allocation11 + $0x20] sm:$0xff] %v2209
    %2574 = vst [vmem:[#allocation11 + $0x30] sm:$0xff] %v2210
    %2575 = vst [vmem:[#allocation11 + $0x38] sm:$0xff] %v2211
    %2576 = vst [vmem:[#allocation11 + $0x40] sm:$0xff] %v2212
    %2577 = vst [vmem:[#allocation11 + $0x48] sm:$0xff] %v2213
    // Predicated region
    $region46: #{tpu_custom_call.1} parent=1 // pred_check
      _
    $region47: #{tpu_custom_call.1} parent=1 // pred_check_branch
      %2579 = sbr.rel (0) target = $region49
    $region48: #{tpu_custom_call.1} parent=1 // pred_region
      %s2581 = ssub.s32 1280, 1280
      %2582 = vsyncadd [#allocation4], %s2581
      %s2583 = sshll.u32 [#allocation11], 4
      %s2584 = int_to_ptr.vmem [resolvable:$true] %s2583
      %2589 = dma.vmem_to_hbm [thread:$0]  %s2584, 1280, %s6, [#allocation4], 640, 640, 40
    $region49: #{tpu_custom_call.1} parent=1 // pred_fallthru
      _
    // Predicated region
    $region50: #{tpu_custom_call.1} parent=1 // pred_check
      _
    $region51: #{tpu_custom_call.1} parent=1 // pred_check_branch
      %2591 = sbr.rel (0) target = $region53
    $region52: #{tpu_custom_call.1} parent=1 // pred_region
      %2592 = dma.done [#allocation4], 1280
    $region53: #{tpu_custom_call.1} parent=1 // pred_fallthru
      _
    %2593 = vsyncpa [#allocation3], 1
    %2594 = vsyncpa [#allocation6], 1
    %2595 = vsyncpa [#allocation9], 1
    %2596 = vsyncpa [#allocation4], 1

</llo_original>
